<compile_context>
chip_gen: v6e
topology: v6e:2x2x1
jax: 0.10.0
libtpu: 0.0.40
codegen_flags: <defaults>
</compile_context>

<pallas_src>
import functools

import jax
import jax.numpy as jnp
from jax import lax
from jax.experimental import pallas as pl
from jax.experimental.pallas import tpu as pltpu

EPS = 1e-5  # ComplexBatchNorm2d default eps


def _round_up(x, m):
    return (x + m - 1) // m * m


def _vmem_limit_bytes():
    try:
        cap = int(pltpu.get_tpu_info().vmem_capacity_bytes)
    except Exception:
        cap = 64 * 1024 * 1024          # conservative (v7x-sized) fallback
    return int(min(cap * 3 // 4, 96 * 1024 * 1024))


# ----------------------------- Pallas kernels --------------------------------

def gram_kernel(xr_ref, xi_ref, grr_ref, gri_ref, gii_ref, sr_ref, si_ref):
    """Per-batch second-moment / sum statistics of the (bf16-quantized) input.

    Accumulates over the spatial ('arbitrary') axis; one partial result per
    batch element (batch axis is 'parallel', so v7x's 2 TensorCores split it).
    The tiny per-batch partials are summed in plain JAX afterwards."""
    @pl.when(pl.program_id(1) == 0)
    def _init():
        grr_ref[...] = jnp.zeros_like(grr_ref)
        gri_ref[...] = jnp.zeros_like(gri_ref)
        gii_ref[...] = jnp.zeros_like(gii_ref)
        sr_ref[...] = jnp.zeros_like(sr_ref)
        si_ref[...] = jnp.zeros_like(si_ref)

    # Quantize exactly like the streaming pass so the BN statistics describe
    # the same data the folded affine is later applied to.
    xr = xr_ref[0].astype(jnp.bfloat16)                       # [Cin, T]
    xi = xi_ref[0].astype(jnp.bfloat16)
    dims = (((1,), (1,)), ((), ()))                           # contract lanes: A @ B^T
    grr_ref[0] += lax.dot_general(xr, xr, dims, preferred_element_type=jnp.float32)
    gri_ref[0] += lax.dot_general(xr, xi, dims, preferred_element_type=jnp.float32)
    gii_ref[0] += lax.dot_general(xi, xi, dims, preferred_element_type=jnp.float32)
    sr_ref[0] += jnp.sum(xr.astype(jnp.float32), axis=1, keepdims=True)
    si_ref[0] += jnp.sum(xi.astype(jnp.float32), axis=1, keepdims=True)


def conv_bn_relu_kernel(xr_ref, xi_ref, wxr_ref, wxi_ref, coef_ref, or_ref, oi_ref):
    """Fused complex transposed conv (k=2, s=2) + folded complex-BN 2x2 affine +
    ReLU for one (batch, spatial-tile) block.  The 4 output taps and the
    real/imag structure are two bf16 MXU matmuls; output is stored in bf16."""
    xr = xr_ref[0].astype(jnp.bfloat16)                       # [Cin, T]
    xi = xi_ref[0].astype(jnp.bfloat16)
    y = (jnp.dot(wxr_ref[...], xr, preferred_element_type=jnp.float32)
         + jnp.dot(wxi_ref[...], xi, preferred_element_type=jnp.float32))  # [8*Cp, T]
    half = y.shape[0] // 2
    yr = y[:half]                                             # 4 taps, real part
    yi = y[half:]                                             # 4 taps, imag part

    c = coef_ref[...]                                         # [4*Cp, 8]
    a11, a12, cr = c[:, 0:1], c[:, 1:2], c[:, 2:3]
    a21, a22, ci = c[:, 3:4], c[:, 4:5], c[:, 5:6]

    or_ref[0] = jnp.maximum(a11 * yr + a12 * yi + cr, 0.0).astype(or_ref.dtype)
    oi_ref[0] = jnp.maximum(a21 * yr + a22 * yi + ci, 0.0).astype(oi_ref.dtype)


# ------------------------------- wrapper --------------------------------------

@functools.partial(jax.jit, static_argnames=("tile_hw",))
def complex_transpose_conv_block(x_r, x_i, w_r, w_i, gamma, beta, *, tile_hw=None):
    """x_r/x_i: [B, Cin, H, W] (NCHW); w_r/w_i: [Cin, Cout, 2, 2] (PyTorch ConvT
    layout); gamma: [Cout, 3] = (Wrr, Wii, Wri); beta: [Cout, 2] = (Br, Bi).
    Returns (out_r, out_i), each [B, Cout, 2H, 2W] in bfloat16."""
    B, Cin, H, W = x_r.shape
    Cout = w_r.shape[1]
    HW = H * W
    Cout_p = _round_up(Cout, 2)          # keeps 4*Cout_p a multiple of 8

    vmem_limit = _vmem_limit_bytes()

    # ---- spatial tile: biggest that fits the VMEM budget, never below 128 ----
    if tile_hw is None:
        per_col_io = 2 * Cin * 4 + 2 * 4 * Cout_p * 2         # f32 in + bf16 out / column
        per_col_tmp = 2 * 8 * Cout_p * 4                      # f32 matmul intermediates
        need_per_col = 2 * per_col_io + per_col_tmp           # x2: double buffering
        cap = (int(vmem_limit * 0.7) // max(need_per_col, 1)) // 128 * 128
        tile_hw = max(128, min(4096, cap, _round_up(HW, 128)))
    assert tile_hw % 128 == 0 and tile_hw > 0

    HW_p = _round_up(HW, tile_hw)        # zero-pad spatial axis (neutral for stats)
    n_hw = HW_p // tile_hw

    xr_flat = x_r.reshape(B, Cin, HW).astype(jnp.float32)
    xi_flat = x_i.reshape(B, Cin, HW).astype(jnp.float32)
    if HW_p != HW:
        pad = ((0, 0), (0, 0), (0, HW_p - HW))
        xr_flat = jnp.pad(xr_flat, pad)
        xi_flat = jnp.pad(xi_flat, pad)

    # ---- weights: 4 output taps stacked on rows, real/imag folded ------------
    def taps(w):                          # [Cin, Cout, 2, 2] -> [4, Cout, Cin]
        return jnp.transpose(w.astype(jnp.float32), (2, 3, 1, 0)).reshape(4, Cout, Cin)

    def stack_taps(m):                    # [4, Cout, Cin] -> [4*Cout_p, Cin]
        m = jnp.pad(m, ((0, 0), (0, Cout_p - Cout), (0, 0)))
        return m.reshape(4 * Cout_p, Cin)

    Wr_q = stack_taps(taps(w_r)).astype(jnp.bfloat16)         # bf16 MXU weights
    Wi_q = stack_taps(taps(w_i)).astype(jnp.bfloat16)
    w_xr = jnp.concatenate([Wr_q, Wi_q], axis=0)              # [8*Cp, Cin] bf16
    w_xi = jnp.concatenate([-Wi_q, Wr_q], axis=0)
    # f32 copies of the *quantized* weights for the analytic statistics
    Wr_f = Wr_q.astype(jnp.float32)
    Wi_f = Wi_q.astype(jnp.float32)
    w_re_rows = jnp.concatenate([Wr_f, -Wi_f], axis=1)        # [4*Cp, 2*Cin]
    w_im_rows = jnp.concatenate([Wi_f,  Wr_f], axis=1)

    cols = B * HW_p

    # ---- phase 1: per-batch Gram / sum statistics (Pallas accumulator) -------
    gram_cost = pl.CostEstimate(
        flops=int(6 * Cin * Cin * cols + 4 * Cin * cols),
        transcendentals=0,
        bytes_accessed=int(2 * Cin * 4 * cols + B * (3 * Cin * Cin + 2 * Cin) * 4))
    g_rr_b, g_ri_b, g_ii_b, s_r_b, s_i_b = pl.pallas_call(
        gram_kernel,
        out_shape=(jax.ShapeDtypeStruct((B, Cin, Cin), jnp.float32),
                   jax.ShapeDtypeStruct((B, Cin, Cin), jnp.float32),
                   jax.ShapeDtypeStruct((B, Cin, Cin), jnp.float32),
                   jax.ShapeDtypeStruct((B, Cin, 1), jnp.float32),
                   jax.ShapeDtypeStruct((B, Cin, 1), jnp.float32)),
        grid=(B, n_hw),
        in_specs=[pl.BlockSpec((1, Cin, tile_hw), lambda b, j: (b, 0, j)),
                  pl.BlockSpec((1, Cin, tile_hw), lambda b, j: (b, 0, j))],
        out_specs=(pl.BlockSpec((1, Cin, Cin), lambda b, j: (b, 0, 0)),
                   pl.BlockSpec((1, Cin, Cin), lambda b, j: (b, 0, 0)),
                   pl.BlockSpec((1, Cin, Cin), lambda b, j: (b, 0, 0)),
                   pl.BlockSpec((1, Cin, 1), lambda b, j: (b, 0, 0)),
                   pl.BlockSpec((1, Cin, 1), lambda b, j: (b, 0, 0))),
        compiler_params=pltpu.CompilerParams(
            dimension_semantics=("parallel", "arbitrary"),
            vmem_limit_bytes=vmem_limit),
        cost_estimate=gram_cost,
    )(xr_flat, xi_flat)

    # ---- analytic BN statistics + folded 2x2 affine (tiny per-channel glue) ---
    g_rr = jnp.sum(g_rr_b, axis=0)
    g_ri = jnp.sum(g_ri_b, axis=0)
    g_ii = jnp.sum(g_ii_b, axis=0)
    s_r = jnp.sum(s_r_b, axis=0)[:, 0]
    s_i = jnp.sum(s_i_b, axis=0)[:, 0]
    G2 = jnp.concatenate([jnp.concatenate([g_rr, g_ri], axis=1),
                          jnp.concatenate([g_ri.T, g_ii], axis=1)], axis=0)
    s2 = jnp.concatenate([s_r, s_i])

    n_tot = jnp.float32(4 * B * HW)       # true element count (padding excluded)

    def per_chan(v):                      # sum the 4 taps -> [Cout_p]
        return v.reshape(4, Cout_p).sum(axis=0)

    mean_r = per_chan(w_re_rows @ s2) / n_tot
    mean_i = per_chan(w_im_rows @ s2) / n_tot
    gw_r = w_re_rows @ G2
    gw_i = w_im_rows @ G2
    e_rr = per_chan(jnp.sum(gw_r * w_re_rows, axis=1)) / n_tot
    e_ii = per_chan(jnp.sum(gw_i * w_im_rows, axis=1)) / n_tot
    e_ri = per_chan(jnp.sum(gw_r * w_im_rows, axis=1)) / n_tot

    valid = jnp.arange(Cout_p) < Cout     # padded channels -> identity covariance
    crr = jnp.where(valid, e_rr - mean_r * mean_r + EPS, 1.0)
    cii = jnp.where(valid, e_ii - mean_i * mean_i + EPS, 1.0)
    cri = jnp.where(valid, e_ri - mean_r * mean_i, 0.0)

    det = crr * cii - cri * cri           # inverse sqrt of the 2x2 covariance
    s = jnp.sqrt(det)
    t = jnp.sqrt(crr + cii + 2.0 * s)
    inv_st = 1.0 / (s * t)
    rrr = (cii + s) * inv_st
    rii = (crr + s) * inv_st
    rri = -cri * inv_st

    gamma_p = jnp.concatenate(
        [gamma.astype(jnp.float32),
         jnp.concatenate([jnp.ones((Cout_p - Cout, 2), jnp.float32),
                          jnp.zeros((Cout_p - Cout, 1), jnp.float32)], axis=1)],
        axis=0)
    beta_p = jnp.pad(beta.astype(jnp.float32), ((0, Cout_p - Cout), (0, 0)))
    g_rr_, g_ii_, g_ri_ = gamma_p[:, 0], gamma_p[:, 1], gamma_p[:, 2]
    b_r, b_i = beta_p[:, 0], beta_p[:, 1]

    a11 = g_rr_ * rrr + g_ri_ * rri
    a12 = g_rr_ * rri + g_ri_ * rii
    a21 = g_ri_ * rrr + g_ii_ * rri
    a22 = g_ri_ * rri + g_ii_ * rii
    c_r = b_r - a11 * mean_r - a12 * mean_i
    c_i = b_i - a21 * mean_r - a22 * mean_i

    def tile4(v):                         # replicate per-channel coeff over taps
        return jnp.tile(v, 4)[:, None]    # [4*Cout_p, 1]

    coef = jnp.concatenate(
        [tile4(a11), tile4(a12), tile4(c_r),
         tile4(a21), tile4(a22), tile4(c_i),
         jnp.zeros((4 * Cout_p, 2), jnp.float32)], axis=1)            # [4*Cp, 8]

    # ---- phase 2: streaming conv + BN-apply + ReLU (Pallas, fully parallel) ---
    conv_cost = pl.CostEstimate(
        flops=int(4 * (8 * Cout_p) * Cin * cols + 10 * (8 * Cout_p) * cols),
        transcendentals=0,
        bytes_accessed=int((2 * Cin * 4 + 2 * 4 * Cout_p * 2) * cols
                           + 2 * 8 * Cout_p * Cin * 2 + 4 * Cout_p * 8 * 4))
    out_r_t, out_i_t = pl.pallas_call(
        conv_bn_relu_kernel,
        out_shape=(jax.ShapeDtypeStruct((B, 4 * Cout_p, HW_p), jnp.bfloat16),
                   jax.ShapeDtypeStruct((B, 4 * Cout_p, HW_p), jnp.bfloat16)),
        grid=(B, n_hw),
        in_specs=[pl.BlockSpec((1, Cin, tile_hw), lambda b, j: (b, 0, j)),
                  pl.BlockSpec((1, Cin, tile_hw), lambda b, j: (b, 0, j)),
                  pl.BlockSpec((8 * Cout_p, Cin), lambda b, j: (0, 0)),
                  pl.BlockSpec((8 * Cout_p, Cin), lambda b, j: (0, 0)),
                  pl.BlockSpec((4 * Cout_p, 8), lambda b, j: (0, 0))],
        out_specs=(pl.BlockSpec((1, 4 * Cout_p, tile_hw), lambda b, j: (b, 0, j)),
                   pl.BlockSpec((1, 4 * Cout_p, tile_hw), lambda b, j: (b, 0, j))),
        compiler_params=pltpu.CompilerParams(
            dimension_semantics=("parallel", "parallel"),
            vmem_limit_bytes=vmem_limit),
        cost_estimate=conv_cost,
    )(xr_flat, xi_flat, w_xr, w_xi, coef)

    # ---- pixel-shuffle the 4 taps back into NCHW [B, Cout, 2H, 2W] (bf16) -----
    def unshuffle(y):
        y = y[:, :, :HW].reshape(B, 2, 2, Cout_p, H, W)[:, :, :, :Cout]
        y = jnp.transpose(y, (0, 3, 4, 1, 5, 2))              # (b, co, h, a, w, c)
        return y.reshape(B, Cout, 2 * H, 2 * W)

    return unshuffle(out_r_t), unshuffle(out_i_t)


# ------------------------------ pure-JAX reference -----------------------------

def ref_block(x_r, x_i, w_r, w_i, gamma, beta, eps=EPS):
    def tconv(w, x):
        B, Cin, H, W = x.shape
        Cout = w.shape[1]
        y = jnp.einsum('bihw,ioac->bohawc', x, w)             # out[.., 2h+a, 2w+c]
        return y.reshape(B, Cout, 2 * H, 2 * W)

    yr = tconv(w_r, x_r) - tconv(w_i, x_i)
    yi = tconv(w_r, x_i) + tconv(w_i, x_r)
    n = yr.shape[0] * yr.shape[2] * yr.shape[3]
    mr = jnp.mean(yr, axis=(0, 2, 3), keepdims=True)
    mi = jnp.mean(yi, axis=(0, 2, 3), keepdims=True)
    xr, xi_ = yr - mr, yi - mi
    crr = jnp.sum(xr * xr, axis=(0, 2, 3), keepdims=True) / n + eps
    cii = jnp.sum(xi_ * xi_, axis=(0, 2, 3), keepdims=True) / n + eps
    cri = jnp.mean(xr * xi_, axis=(0, 2, 3), keepdims=True)
    det = crr * cii - cri * cri
    s = jnp.sqrt(det)
    t = jnp.sqrt(crr + cii + 2.0 * s)
    inv = 1.0 / (s * t)
    rrr, rii, rri = (cii + s) * inv, (crr + s) * inv, -cri * inv
    wr_ = rrr * xr + rri * xi_
    wi_ = rii * xi_ + rri * xr
    g_rr = gamma[:, 0][None, :, None, None]
    g_ii = gamma[:, 1][None, :, None, None]
    g_ri = gamma[:, 2][None, :, None, None]
    b_r = beta[:, 0][None, :, None, None]
    b_i = beta[:, 1][None, :, None, None]
    zr = g_rr * wr_ + g_ri * wi_ + b_r
    zi = g_ri * wr_ + g_ii * wi_ + b_i
    return jnp.maximum(zr, 0.0), jnp.maximum(zi, 0.0)


if __name__ == "__main__":
    key = jax.random.PRNGKey(0)
    B, Cin, Cout, H, W = 2, 4, 8, 16, 16                      # HW = 256 per batch
    k = jax.random.split(key, 6)
    x_r = jax.random.normal(k[0], (B, Cin, H, W), jnp.float32)
    x_i = jax.random.normal(k[1], (B, Cin, H, W), jnp.float32)
    scale = 1.0 / (Cin * 2 * 2) ** 0.5
    w_r = jax.random.uniform(k[2], (Cin, Cout, 2, 2), jnp.float32, -scale, scale)
    w_i = jax.random.uniform(k[3], (Cin, Cout, 2, 2), jnp.float32, -scale, scale)
    # ComplexBatchNorm2d default init (Wrr=Wii=sqrt(2), Wri=0, beta=0) plus a small
    # perturbation so every term of the complex affine is exercised.
    gamma = jnp.concatenate([jnp.full((Cout, 2), 2.0 ** 0.5, jnp.float32),
                             jnp.zeros((Cout, 1), jnp.float32)], axis=1)
    gamma = gamma + 0.05 * jax.random.normal(k[4], (Cout, 3), jnp.float32)
    beta = 0.05 * jax.random.normal(k[5], (Cout, 2), jnp.float32)

    # tile_hw=128 -> grid (B=2, 2 spatial tiles): exercises the statistics
    # accumulator, the per-batch parallel axis and the parallel streaming pass
    # (auto tile selection picks much larger tiles for real shapes).
    out_r, out_i = complex_transpose_conv_block(x_r, x_i, w_r, w_i, gamma, beta,
                                                tile_hw=128)
    jax.block_until_ready((out_r, out_i))

    ref_r, ref_i = ref_block(x_r, x_i, w_r, w_i, gamma, beta)
    assert out_r.shape == (B, Cout, 2 * H, 2 * W) and out_i.shape == out_r.shape
    # bf16 MXU inputs/weights and bf16 output writeback (f32 accumulation)
    # -> slightly looser tolerance than pure f32.
    assert jnp.allclose(out_r.astype(jnp.float32), ref_r, atol=5e-2, rtol=2e-2)
    assert jnp.allclose(out_i.astype(jnp.float32), ref_i, atol=5e-2, rtol=2e-2)
    print("KERNEL_OK")
</pallas_src>

<mosaic_0001>
module attributes {stable_mosaic.version = 11 : i64} {
  func.func @gram_kernel(%arg0: i32, %arg1: i32, %arg2: memref<1x4x128xf32, #tpu.memory_space<vmem>>, %arg3: memref<1x4x128xf32, #tpu.memory_space<vmem>>, %arg4: memref<1x4x4xf32, #tpu.memory_space<vmem>>, %arg5: memref<1x4x4xf32, #tpu.memory_space<vmem>>, %arg6: memref<1x4x4xf32, #tpu.memory_space<vmem>>, %arg7: memref<1x4x1xf32, #tpu.memory_space<vmem>>, %arg8: memref<1x4x1xf32, #tpu.memory_space<vmem>>) attributes {dimension_semantics = [#tpu.dimension_semantics<parallel>, #tpu.dimension_semantics<arbitrary>], iteration_bounds = array<i64: 2, 2>, scalar_prefetch = 0 : i64, scratch_operands = 0 : i64, tpu.core_type = #tpu.core_type<tc>, window_params = [{transform_indices = @transform_0, window_bounds = array<i64: 1, 4, 128>}, {transform_indices = @transform_1, window_bounds = array<i64: 1, 4, 128>}, {transform_indices = @transform_2, window_bounds = array<i64: 1, 4, 4>}, {transform_indices = @transform_3, window_bounds = array<i64: 1, 4, 4>}, {transform_indices = @transform_4, window_bounds = array<i64: 1, 4, 4>}, {transform_indices = @transform_5, window_bounds = array<i64: 1, 4, 1>}, {transform_indices = @transform_6, window_bounds = array<i64: 1, 4, 1>}]} {
    %c0_i32 = arith.constant 0 : i32
    %0 = arith.cmpi eq, %arg1, %c0_i32 : i32
    %1 = arith.extui %0 : i1 to i32
    %c0_i32_0 = arith.constant 0 : i32
    %2 = arith.cmpi ne, %1, %c0_i32_0 : i32
    scf.if %2 {
      %cst_40 = arith.constant 0.000000e+00 : f32
      %48 = vector.broadcast %cst_40 : f32 to vector<1x4x4xf32>
      %c0_41 = arith.constant 0 : index
      %c0_42 = arith.constant 0 : index
      %c0_43 = arith.constant 0 : index
      %49 = vector.load %arg4[%c0_41, %c0_42, %c0_43] : memref<1x4x4xf32, #tpu.memory_space<vmem>>, vector<1x4x4xf32>
      tpu.vector_store %arg4[%c0_41, %c0_42, %c0_43], %48 {strides = array<i32>} : memref<1x4x4xf32, #tpu.memory_space<vmem>>, vector<1x4x4xf32>,
      %cst_44 = arith.constant 0.000000e+00 : f32
      %50 = vector.broadcast %cst_44 : f32 to vector<1x4x4xf32>
      %c0_45 = arith.constant 0 : index
      %c0_46 = arith.constant 0 : index
      %c0_47 = arith.constant 0 : index
      %51 = vector.load %arg5[%c0_45, %c0_46, %c0_47] : memref<1x4x4xf32, #tpu.memory_space<vmem>>, vector<1x4x4xf32>
      tpu.vector_store %arg5[%c0_45, %c0_46, %c0_47], %50 {strides = array<i32>} : memref<1x4x4xf32, #tpu.memory_space<vmem>>, vector<1x4x4xf32>,
      %cst_48 = arith.constant 0.000000e+00 : f32
      %52 = vector.broadcast %cst_48 : f32 to vector<1x4x4xf32>
      %c0_49 = arith.constant 0 : index
      %c0_50 = arith.constant 0 : index
      %c0_51 = arith.constant 0 : index
      %53 = vector.load %arg6[%c0_49, %c0_50, %c0_51] : memref<1x4x4xf32, #tpu.memory_space<vmem>>, vector<1x4x4xf32>
      tpu.vector_store %arg6[%c0_49, %c0_50, %c0_51], %52 {strides = array<i32>} : memref<1x4x4xf32, #tpu.memory_space<vmem>>, vector<1x4x4xf32>,
      %cst_52 = arith.constant 0.000000e+00 : f32
      %54 = vector.broadcast %cst_52 : f32 to vector<1x4x1xf32>
      %c0_53 = arith.constant 0 : index
      %c0_54 = arith.constant 0 : index
      %c0_55 = arith.constant 0 : index
      %55 = vector.load %arg7[%c0_53, %c0_54, %c0_55] : memref<1x4x1xf32, #tpu.memory_space<vmem>>, vector<1x4x1xf32>
      tpu.vector_store %arg7[%c0_53, %c0_54, %c0_55], %54 {strides = array<i32>} : memref<1x4x1xf32, #tpu.memory_space<vmem>>, vector<1x4x1xf32>,
      %cst_56 = arith.constant 0.000000e+00 : f32
      %56 = vector.broadcast %cst_56 : f32 to vector<1x4x1xf32>
      %c0_57 = arith.constant 0 : index
      %c0_58 = arith.constant 0 : index
      %c0_59 = arith.constant 0 : index
      %57 = vector.load %arg8[%c0_57, %c0_58, %c0_59] : memref<1x4x1xf32, #tpu.memory_space<vmem>>, vector<1x4x1xf32>
      tpu.vector_store %arg8[%c0_57, %c0_58, %c0_59], %56 {strides = array<i32>} : memref<1x4x1xf32, #tpu.memory_space<vmem>>, vector<1x4x1xf32>,
    } else {
    }
    %c0 = arith.constant 0 : index
    %c0_1 = arith.constant 0 : index
    %c0_2 = arith.constant 0 : index
    %3 = vector.load %arg2[%c0, %c0_1, %c0_2] : memref<1x4x128xf32, #tpu.memory_space<vmem>>, vector<1x4x128xf32>
    %4 = vector.shape_cast %3 : vector<1x4x128xf32> to vector<4x128xf32>
    %5 = arith.truncf %4 : vector<4x128xf32> to vector<4x128xbf16>
    %c0_3 = arith.constant 0 : index
    %c0_4 = arith.constant 0 : index
    %c0_5 = arith.constant 0 : index
    %6 = vector.load %arg3[%c0_3, %c0_4, %c0_5] : memref<1x4x128xf32, #tpu.memory_space<vmem>>, vector<1x4x128xf32>
    %7 = vector.shape_cast %6 : vector<1x4x128xf32> to vector<4x128xf32>
    %8 = arith.truncf %7 : vector<4x128xf32> to vector<4x128xbf16>
    %c0_6 = arith.constant 0 : index
    %c0_7 = arith.constant 0 : index
    %c0_8 = arith.constant 0 : index
    %9 = vector.load %arg4[%c0_6, %c0_7, %c0_8] : memref<1x4x4xf32, #tpu.memory_space<vmem>>, vector<1x4x4xf32>
    %10 = vector.shape_cast %9 : vector<1x4x4xf32> to vector<4x4xf32>
    %cst = arith.constant dense<0.000000e+00> : vector<4x4xf32>
    %11 = tpu.matmul %5, %5, %cst {dimension_numbers = #tpu.dot_dimension_numbers<[1], [1], [0], [0], [0, 0, 1, 0], [], []>} : vector<4x128xbf16>, vector<4x128xbf16>, vector<4x4xf32> -> vector<4x4xf32>
    %12 = arith.addf %10, %11 : vector<4x4xf32>
    %c0_9 = arith.constant 0 : index
    %c0_10 = arith.constant 0 : index
    %c0_11 = arith.constant 0 : index
    %13 = vector.load %arg4[%c0_9, %c0_10, %c0_11] : memref<1x4x4xf32, #tpu.memory_space<vmem>>, vector<1x4x4xf32>
    %14 = vector.shape_cast %13 : vector<1x4x4xf32> to vector<4x4xf32>
    %15 = vector.shape_cast %12 : vector<4x4xf32> to vector<1x4x4xf32>
    tpu.vector_store %arg4[%c0_9, %c0_10, %c0_11], %15 {strides = array<i32>} : memref<1x4x4xf32, #tpu.memory_space<vmem>>, vector<1x4x4xf32>,
    %c0_12 = arith.constant 0 : index
    %c0_13 = arith.constant 0 : index
    %c0_14 = arith.constant 0 : index
    %16 = vector.load %arg5[%c0_12, %c0_13, %c0_14] : memref<1x4x4xf32, #tpu.memory_space<vmem>>, vector<1x4x4xf32>
    %17 = vector.shape_cast %16 : vector<1x4x4xf32> to vector<4x4xf32>
    %cst_15 = arith.constant dense<0.000000e+00> : vector<4x4xf32>
    %18 = tpu.matmul %5, %8, %cst_15 {dimension_numbers = #tpu.dot_dimension_numbers<[1], [1], [0], [0], [0, 0, 1, 0], [], []>} : vector<4x128xbf16>, vector<4x128xbf16>, vector<4x4xf32> -> vector<4x4xf32>
    %19 = arith.addf %17, %18 : vector<4x4xf32>
    %c0_16 = arith.constant 0 : index
    %c0_17 = arith.constant 0 : index
    %c0_18 = arith.constant 0 : index
    %20 = vector.load %arg5[%c0_16, %c0_17, %c0_18] : memref<1x4x4xf32, #tpu.memory_space<vmem>>, vector<1x4x4xf32>
    %21 = vector.shape_cast %20 : vector<1x4x4xf32> to vector<4x4xf32>
    %22 = vector.shape_cast %19 : vector<4x4xf32> to vector<1x4x4xf32>
    tpu.vector_store %arg5[%c0_16, %c0_17, %c0_18], %22 {strides = array<i32>} : memref<1x4x4xf32, #tpu.memory_space<vmem>>, vector<1x4x4xf32>,
    %c0_19 = arith.constant 0 : index
    %c0_20 = arith.constant 0 : index
    %c0_21 = arith.constant 0 : index
    %23 = vector.load %arg6[%c0_19, %c0_20, %c0_21] : memref<1x4x4xf32, #tpu.memory_space<vmem>>, vector<1x4x4xf32>
    %24 = vector.shape_cast %23 : vector<1x4x4xf32> to vector<4x4xf32>
    %cst_22 = arith.constant dense<0.000000e+00> : vector<4x4xf32>
    %25 = tpu.matmul %8, %8, %cst_22 {dimension_numbers = #tpu.dot_dimension_numbers<[1], [1], [0], [0], [0, 0, 1, 0], [], []>} : vector<4x128xbf16>, vector<4x128xbf16>, vector<4x4xf32> -> vector<4x4xf32>
    %26 = arith.addf %24, %25 : vector<4x4xf32>
    %c0_23 = arith.constant 0 : index
    %c0_24 = arith.constant 0 : index
    %c0_25 = arith.constant 0 : index
    %27 = vector.load %arg6[%c0_23, %c0_24, %c0_25] : memref<1x4x4xf32, #tpu.memory_space<vmem>>, vector<1x4x4xf32>
    %28 = vector.shape_cast %27 : vector<1x4x4xf32> to vector<4x4xf32>
    %29 = vector.shape_cast %26 : vector<4x4xf32> to vector<1x4x4xf32>
    tpu.vector_store %arg6[%c0_23, %c0_24, %c0_25], %29 {strides = array<i32>} : memref<1x4x4xf32, #tpu.memory_space<vmem>>, vector<1x4x4xf32>,
    %c0_26 = arith.constant 0 : index
    %c0_27 = arith.constant 0 : index
    %c0_28 = arith.constant 0 : index
    %30 = vector.load %arg7[%c0_26, %c0_27, %c0_28] : memref<1x4x1xf32, #tpu.memory_space<vmem>>, vector<1x4x1xf32>
    %31 = vector.shape_cast %30 : vector<1x4x1xf32> to vector<4x1xf32>
    %32 = arith.extf %5 : vector<4x128xbf16> to vector<4x128xf32>
    %cst_29 = arith.constant dense<0.000000e+00> : vector<4xf32>
    %33 = vector.multi_reduction <add>, %32, %cst_29 [1] : vector<4x128xf32> to vector<4xf32>
    %34 = vector.shape_cast %33 : vector<4xf32> to vector<4x1xf32>
    %35 = arith.addf %31, %34 : vector<4x1xf32>
    %c0_30 = arith.constant 0 : index
    %c0_31 = arith.constant 0 : index
    %c0_32 = arith.constant 0 : index
    %36 = vector.load %arg7[%c0_30, %c0_31, %c0_32] : memref<1x4x1xf32, #tpu.memory_space<vmem>>, vector<1x4x1xf32>
    %37 = vector.shape_cast %36 : vector<1x4x1xf32> to vector<4x1xf32>
    %38 = vector.shape_cast %35 : vector<4x1xf32> to vector<1x4x1xf32>
    tpu.vector_store %arg7[%c0_30, %c0_31, %c0_32], %38 {strides = array<i32>} : memref<1x4x1xf32, #tpu.memory_space<vmem>>, vector<1x4x1xf32>,
    %c0_33 = arith.constant 0 : index
    %c0_34 = arith.constant 0 : index
    %c0_35 = arith.constant 0 : index
    %39 = vector.load %arg8[%c0_33, %c0_34, %c0_35] : memref<1x4x1xf32, #tpu.memory_space<vmem>>, vector<1x4x1xf32>
    %40 = vector.shape_cast %39 : vector<1x4x1xf32> to vector<4x1xf32>
    %41 = arith.extf %8 : vector<4x128xbf16> to vector<4x128xf32>
    %cst_36 = arith.constant dense<0.000000e+00> : vector<4xf32>
    %42 = vector.multi_reduction <add>, %41, %cst_36 [1] : vector<4x128xf32> to vector<4xf32>
    %43 = vector.shape_cast %42 : vector<4xf32> to vector<4x1xf32>
    %44 = arith.addf %40, %43 : vector<4x1xf32>
    %c0_37 = arith.constant 0 : index
    %c0_38 = arith.constant 0 : index
    %c0_39 = arith.constant 0 : index
    %45 = vector.load %arg8[%c0_37, %c0_38, %c0_39] : memref<1x4x1xf32, #tpu.memory_space<vmem>>, vector<1x4x1xf32>
    %46 = vector.shape_cast %45 : vector<1x4x1xf32> to vector<4x1xf32>
    %47 = vector.shape_cast %44 : vector<4x1xf32> to vector<1x4x1xf32>
    tpu.vector_store %arg8[%c0_37, %c0_38, %c0_39], %47 {strides = array<i32>} : memref<1x4x1xf32, #tpu.memory_space<vmem>>, vector<1x4x1xf32>,
    return
  }
  func.func @transform_0(%arg0: i32, %arg1: i32) -> (i32, i32, i32) {
    %c0_i32 = arith.constant 0 : i32
    %c0_i32_0 = arith.constant 0 : i32
    return %arg0, %c0_i32, %arg1 : i32, i32, i32
  }
  func.func @transform_1(%arg0: i32, %arg1: i32) -> (i32, i32, i32) {
    %c0_i32 = arith.constant 0 : i32
    %c0_i32_0 = arith.constant 0 : i32
    return %arg0, %c0_i32, %arg1 : i32, i32, i32
  }
  func.func @transform_2(%arg0: i32, %arg1: i32) -> (i32, i32, i32) {
    %c0_i32 = arith.constant 0 : i32
    %c0_i32_0 = arith.constant 0 : i32
    %c0_i32_1 = arith.constant 0 : i32
    return %arg0, %c0_i32, %c0_i32_0 : i32, i32, i32
  }
  func.func @transform_3(%arg0: i32, %arg1: i32) -> (i32, i32, i32) {
    %c0_i32 = arith.constant 0 : i32
    %c0_i32_0 = arith.constant 0 : i32
    %c0_i32_1 = arith.constant 0 : i32
    return %arg0, %c0_i32, %c0_i32_0 : i32, i32, i32
  }
  func.func @transform_4(%arg0: i32, %arg1: i32) -> (i32, i32, i32) {
    %c0_i32 = arith.constant 0 : i32
    %c0_i32_0 = arith.constant 0 : i32
    %c0_i32_1 = arith.constant 0 : i32
    return %arg0, %c0_i32, %c0_i32_0 : i32, i32, i32
  }
  func.func @transform_5(%arg0: i32, %arg1: i32) -> (i32, i32, i32) {
    %c0_i32 = arith.constant 0 : i32
    %c0_i32_0 = arith.constant 0 : i32
    %c0_i32_1 = arith.constant 0 : i32
    return %arg0, %c0_i32, %c0_i32_0 : i32, i32, i32
  }
  func.func @transform_6(%arg0: i32, %arg1: i32) -> (i32, i32, i32) {
    %c0_i32 = arith.constant 0 : i32
    %c0_i32_0 = arith.constant 0 : i32
    %c0_i32_1 = arith.constant 0 : i32
    return %arg0, %c0_i32, %c0_i32_0 : i32, i32, i32
  }
}

module attributes {stable_mosaic.version = 11 : i64} {
  func.func @conv_bn_relu_kernel(%arg0: i32, %arg1: i32, %arg2: memref<1x4x128xf32, #tpu.memory_space<vmem>>, %arg3: memref<1x4x128xf32, #tpu.memory_space<vmem>>, %arg4: memref<64x4xbf16, #tpu.memory_space<vmem>>, %arg5: memref<64x4xbf16, #tpu.memory_space<vmem>>, %arg6: memref<32x8xf32, #tpu.memory_space<vmem>>, %arg7: memref<1x32x128xbf16, #tpu.memory_space<vmem>>, %arg8: memref<1x32x128xbf16, #tpu.memory_space<vmem>>) attributes {dimension_semantics = [#tpu.dimension_semantics<parallel>, #tpu.dimension_semantics<parallel>], iteration_bounds = array<i64: 2, 2>, scalar_prefetch = 0 : i64, scratch_operands = 0 : i64, tpu.core_type = #tpu.core_type<tc>, window_params = [{transform_indices = @transform_0, window_bounds = array<i64: 1, 4, 128>}, {transform_indices = @transform_1, window_bounds = array<i64: 1, 4, 128>}, {pipeline_mode = #tpu.pipeline_mode<synchronous>, transform_indices = @transform_2, window_bounds = array<i64: 64, 4>}, {pipeline_mode = #tpu.pipeline_mode<synchronous>, transform_indices = @transform_3, window_bounds = array<i64: 64, 4>}, {pipeline_mode = #tpu.pipeline_mode<synchronous>, transform_indices = @transform_4, window_bounds = array<i64: 32, 8>}, {transform_indices = @transform_5, window_bounds = array<i64: 1, 32, 128>}, {transform_indices = @transform_6, window_bounds = array<i64: 1, 32, 128>}]} {
    %c0 = arith.constant 0 : index
    %c0_0 = arith.constant 0 : index
    %c0_1 = arith.constant 0 : index
    %0 = vector.load %arg2[%c0, %c0_0, %c0_1] : memref<1x4x128xf32, #tpu.memory_space<vmem>>, vector<1x4x128xf32>
    %1 = vector.shape_cast %0 : vector<1x4x128xf32> to vector<4x128xf32>
    %2 = arith.truncf %1 : vector<4x128xf32> to vector<4x128xbf16>
    %c0_2 = arith.constant 0 : index
    %c0_3 = arith.constant 0 : index
    %c0_4 = arith.constant 0 : index
    %3 = vector.load %arg3[%c0_2, %c0_3, %c0_4] : memref<1x4x128xf32, #tpu.memory_space<vmem>>, vector<1x4x128xf32>
    %4 = vector.shape_cast %3 : vector<1x4x128xf32> to vector<4x128xf32>
    %5 = arith.truncf %4 : vector<4x128xf32> to vector<4x128xbf16>
    %c0_5 = arith.constant 0 : index
    %c0_6 = arith.constant 0 : index
    %6 = vector.load %arg4[%c0_5, %c0_6] : memref<64x4xbf16, #tpu.memory_space<vmem>>, vector<64x4xbf16>
    %cst = arith.constant dense<0.000000e+00> : vector<64x128xf32>
    %7 = tpu.matmul %6, %2, %cst {dimension_numbers = #tpu.dot_dimension_numbers<[1], [0], [0], [1], [0, 0, 1, 1], [], []>} : vector<64x4xbf16>, vector<4x128xbf16>, vector<64x128xf32> -> vector<64x128xf32>
    %c0_7 = arith.constant 0 : index
    %c0_8 = arith.constant 0 : index
    %8 = vector.load %arg5[%c0_7, %c0_8] : memref<64x4xbf16, #tpu.memory_space<vmem>>, vector<64x4xbf16>
    %cst_9 = arith.constant dense<0.000000e+00> : vector<64x128xf32>
    %9 = tpu.matmul %8, %5, %cst_9 {dimension_numbers = #tpu.dot_dimension_numbers<[1], [0], [0], [1], [0, 0, 1, 1], [], []>} : vector<64x4xbf16>, vector<4x128xbf16>, vector<64x128xf32> -> vector<64x128xf32>
    %10 = arith.addf %7, %9 : vector<64x128xf32>
    %11 = vector.extract_strided_slice %10 {offsets = [0, 0], sizes = [32, 128], strides = [1, 1]} : vector<64x128xf32> to vector<32x128xf32>
    %12 = vector.extract_strided_slice %10 {offsets = [32, 0], sizes = [32, 128], strides = [1, 1]} : vector<64x128xf32> to vector<32x128xf32>
    %c0_10 = arith.constant 0 : index
    %c0_11 = arith.constant 0 : index
    %13 = vector.load %arg6[%c0_10, %c0_11] : memref<32x8xf32, #tpu.memory_space<vmem>>, vector<32x8xf32>
    %14 = vector.extract_strided_slice %13 {offsets = [0, 0], sizes = [32, 1], strides = [1, 1]} : vector<32x8xf32> to vector<32x1xf32>
    %15 = vector.extract_strided_slice %13 {offsets = [0, 1], sizes = [32, 1], strides = [1, 1]} : vector<32x8xf32> to vector<32x1xf32>
    %16 = vector.extract_strided_slice %13 {offsets = [0, 2], sizes = [32, 1], strides = [1, 1]} : vector<32x8xf32> to vector<32x1xf32>
    %17 = vector.extract_strided_slice %13 {offsets = [0, 3], sizes = [32, 1], strides = [1, 1]} : vector<32x8xf32> to vector<32x1xf32>
    %18 = vector.extract_strided_slice %13 {offsets = [0, 4], sizes = [32, 1], strides = [1, 1]} : vector<32x8xf32> to vector<32x1xf32>
    %19 = vector.extract_strided_slice %13 {offsets = [0, 5], sizes = [32, 1], strides = [1, 1]} : vector<32x8xf32> to vector<32x1xf32>
    %20 = vector.broadcast %14 : vector<32x1xf32> to vector<32x128xf32>
    %21 = arith.mulf %20, %11 : vector<32x128xf32>
    %22 = vector.broadcast %15 : vector<32x1xf32> to vector<32x128xf32>
    %23 = arith.mulf %22, %12 : vector<32x128xf32>
    %24 = arith.addf %21, %23 : vector<32x128xf32>
    %25 = vector.broadcast %16 : vector<32x1xf32> to vector<32x128xf32>
    %26 = arith.addf %24, %25 : vector<32x128xf32>
    %cst_12 = arith.constant 0.000000e+00 : f32
    %27 = vector.broadcast %cst_12 : f32 to vector<32x128xf32>
    %28 = arith.maximumf %26, %27 : vector<32x128xf32>
    %29 = arith.truncf %28 : vector<32x128xf32> to vector<32x128xbf16>
    %c0_13 = arith.constant 0 : index
    %c0_14 = arith.constant 0 : index
    %c0_15 = arith.constant 0 : index
    %30 = vector.load %arg7[%c0_13, %c0_14, %c0_15] : memref<1x32x128xbf16, #tpu.memory_space<vmem>>, vector<1x32x128xbf16>
    %31 = vector.shape_cast %30 : vector<1x32x128xbf16> to vector<32x128xbf16>
    %32 = vector.shape_cast %29 : vector<32x128xbf16> to vector<1x32x128xbf16>
    tpu.vector_store %arg7[%c0_13, %c0_14, %c0_15], %32 {strides = array<i32>} : memref<1x32x128xbf16, #tpu.memory_space<vmem>>, vector<1x32x128xbf16>,
    %33 = vector.broadcast %17 : vector<32x1xf32> to vector<32x128xf32>
    %34 = arith.mulf %33, %11 : vector<32x128xf32>
    %35 = vector.broadcast %18 : vector<32x1xf32> to vector<32x128xf32>
    %36 = arith.mulf %35, %12 : vector<32x128xf32>
    %37 = arith.addf %34, %36 : vector<32x128xf32>
    %38 = vector.broadcast %19 : vector<32x1xf32> to vector<32x128xf32>
    %39 = arith.addf %37, %38 : vector<32x128xf32>
    %cst_16 = arith.constant 0.000000e+00 : f32
    %40 = vector.broadcast %cst_16 : f32 to vector<32x128xf32>
    %41 = arith.maximumf %39, %40 : vector<32x128xf32>
    %42 = arith.truncf %41 : vector<32x128xf32> to vector<32x128xbf16>
    %c0_17 = arith.constant 0 : index
    %c0_18 = arith.constant 0 : index
    %c0_19 = arith.constant 0 : index
    %43 = vector.load %arg8[%c0_17, %c0_18, %c0_19] : memref<1x32x128xbf16, #tpu.memory_space<vmem>>, vector<1x32x128xbf16>
    %44 = vector.shape_cast %43 : vector<1x32x128xbf16> to vector<32x128xbf16>
    %45 = vector.shape_cast %42 : vector<32x128xbf16> to vector<1x32x128xbf16>
    tpu.vector_store %arg8[%c0_17, %c0_18, %c0_19], %45 {strides = array<i32>} : memref<1x32x128xbf16, #tpu.memory_space<vmem>>, vector<1x32x128xbf16>,
    return
  }
  func.func @transform_0(%arg0: i32, %arg1: i32) -> (i32, i32, i32) {
    %c0_i32 = arith.constant 0 : i32
    %c0_i32_0 = arith.constant 0 : i32
    return %arg0, %c0_i32, %arg1 : i32, i32, i32
  }
  func.func @transform_1(%arg0: i32, %arg1: i32) -> (i32, i32, i32) {
    %c0_i32 = arith.constant 0 : i32
    %c0_i32_0 = arith.constant 0 : i32
    return %arg0, %c0_i32, %arg1 : i32, i32, i32
  }
  func.func @transform_2(%arg0: i32, %arg1: i32) -> (i32, i32) {
    %c0_i32 = arith.constant 0 : i32
    %c0_i32_0 = arith.constant 0 : i32
    %c0_i32_1 = arith.constant 0 : i32
    return %c0_i32, %c0_i32_0 : i32, i32
  }
  func.func @transform_3(%arg0: i32, %arg1: i32) -> (i32, i32) {
    %c0_i32 = arith.constant 0 : i32
    %c0_i32_0 = arith.constant 0 : i32
    %c0_i32_1 = arith.constant 0 : i32
    return %c0_i32, %c0_i32_0 : i32, i32
  }
  func.func @transform_4(%arg0: i32, %arg1: i32) -> (i32, i32) {
    %c0_i32 = arith.constant 0 : i32
    %c0_i32_0 = arith.constant 0 : i32
    %c0_i32_1 = arith.constant 0 : i32
    return %c0_i32, %c0_i32_0 : i32, i32
  }
  func.func @transform_5(%arg0: i32, %arg1: i32) -> (i32, i32, i32) {
    %c0_i32 = arith.constant 0 : i32
    %c0_i32_0 = arith.constant 0 : i32
    return %arg0, %c0_i32, %arg1 : i32, i32, i32
  }
  func.func @transform_6(%arg0: i32, %arg1: i32) -> (i32, i32, i32) {
    %c0_i32 = arith.constant 0 : i32
    %c0_i32_0 = arith.constant 0 : i32
    return %arg0, %c0_i32, %arg1 : i32, i32, i32
  }
}

</mosaic_0001>

<llo_original>
// kernel: tile.43
$region0: #{tile.43}
  #allocation0 [shape = 's32[1]{0}', space=sflag, size = 0x4, scoped, tag = 'scoped memory for tile.43']
  %s0 = inlined_call_operand.vmem [shape: f32[8], index: 0, kind: input, shape index: {}]
  %s1 = inlined_call_operand.vmem [shape: f32[4,8], index: 1, kind: output, shape index: {}]
  // Predicated region
  $region2: #{tile.43} parent=0 // pred_check
    _
  $region3: #{tile.43} parent=0 // pred_check_branch
    %3 = sbr.rel (0) target = $region5
  $region4: #{tile.43} parent=0 // pred_region
    _
  $region5: #{tile.43} parent=0 // pred_fallthru
    _
  %v4 = vld [vmem:[%s0] ss:$0 sm:$0xff]
  %5 = vst [vmem:[%s1] sm:$0xf] %v4

// kernel: tile.44
$region0: #{tile.44}
  %s0 = inlined_call_operand.vmem [shape: f32[4,8], index: 0, kind: input, shape index: {}]
  %s1 = inlined_call_operand.vmem [shape: f32[32,1], index: 1, kind: output, shape index: {}]
  $region1: #{tile.44} parent=0
    #allocation0 [shape = 'u8[4096]{0}', space=vmem, size = 0x1000, scoped, tag = 'scoped mem for output reshape']
    #allocation1 [shape = 'u8[4096]{0}', space=vmem, size = 0x1000, scoped, tag = 'scoped mem for input reshape']
    %s3 = sshll.u32 1, 4
    %s4 = ssub.s32 %s3, 1
    %v5 = vld [vmem:[%s0] sm:%s4]
    %6 = vst [vmem:[#allocation1] sm:%s4] %v5
    %v7 = vld [vmem:[#allocation1] sm:$0x1]
    %vm8 = vcmask 64512
    %9 = vst.msk [vmem:[#allocation0] sm:$0x1] %vm8, %v7
    %s10 = scalar_lea.vmem [#allocation1], 3
    %v11 = vld [vmem:[%s10] sm:$0x1]
    %12 = vrot.lane.b32.xlu0 %v11, 24
    %v13 = vpop.permute.xlu0 %12
    %vm14 = vcmask 261312
    %15 = vst.msk [vmem:[#allocation0] sm:$0x1] %vm14, %v13
    %s16 = scalar_lea.vmem [#allocation1], 2
    %v17 = vld [vmem:[%s16] sm:$0x1]
    %18 = vrot.lane.b32.xlu0 %v17, 16
    %v19 = vpop.permute.xlu0 %18
    %vm20 = vcmask 195712
    %21 = vst.msk [vmem:[#allocation0] sm:$0x1] %vm20, %v19
    %s22 = scalar_lea.vmem [#allocation1], 1
    %v23 = vld [vmem:[%s22] sm:$0x1]
    %24 = vrot.lane.b32.xlu0 %v23, 8
    %v25 = vpop.permute.xlu0 %24
    %vm26 = vcmask 130112
    %27 = vst.msk [vmem:[#allocation0] sm:$0x1] %vm26, %v25
    %s29 = sshll.u32 1, 1
    %s30 = ssub.s32 %s29, 1
    %v32 = vld [vmem:[#allocation0] sm:%s30]
    %s33 = sshll.u32 1, 1
    %s34 = ssub.s32 %s33, 1
    %35 = vst [vmem:[%s1] sm:%s34] %v32

// kernel: complex_transpose_conv_block.2
$region0: #{complex_transpose_conv_block.2}
  #allocation0 [shape = 'u32[]', space=smem, size = 0x4, offset = 0x4, fixed_abs, tag = 'smem constant byte address 0x4 - core index']
  #allocation1 [shape = 'u32[144,128]{1,0:T(1,128)}', space=vmem, size = 0x12000, scoped, tag = 'internal scratch']
  %s0 = inlined_call_operand.vmem [shape: f32[2,4,256], index: 0, kind: input, shape index: {}]
  %s1 = inlined_call_operand.vmem [shape: f32[2,4,256], index: 1, kind: input, shape index: {}]
  %s2 = inlined_call_operand.vmem [shape: f32[2,4,4], index: 2, kind: output, shape index: {0}]
  %s3 = inlined_call_operand.vmem [shape: f32[2,4,4], index: 3, kind: output, shape index: {1}]
  %s4 = inlined_call_operand.vmem [shape: f32[2,4,4], index: 4, kind: output, shape index: {2}]
  %s5 = inlined_call_operand.vmem [shape: f32[2,4,1], index: 5, kind: output, shape index: {3}]
  %s6 = inlined_call_operand.vmem [shape: f32[2,4,1], index: 6, kind: output, shape index: {4}]
  %7 = xla_tuple %s2, %s3, %s4, %s5, %s6
  %s8 = sld [smem:[#allocation0]]
  $region77: #{complex_transpose_conv_block.2} parent=0
    _
  %s10 = ssub.s32 1, %s8
  %s11 = scalar_select 0, %s10, %s8
  loop: start=0, step=1, limit=6
  $region2: #{complex_transpose_conv_block.2} parent=0 // loop_pre_header
    _
  $region3: #{complex_transpose_conv_block.2} parent=0 // loop_header
    %s13 = sphi 0, %s17
    %p14 = scmp.ge.s32.totalorder %s13, 6
    %s20 = sphi 0, %s32
    %s21 = sphi 0, %s28
    %s22 = sphi 0, %s20
    %s23 = sphi 0, %s21
    %s24 = sphi 0, %s22
    %s25 = sphi 0, %s23
    %s37 = sphi 0, %s39
    %s40 = sphi 0, %s37
    %s41 = sphi 0, %s40
    %s57 = sphi 0, %s41
    %s65 = sphi 0, %s67
    %s68 = sphi 0, %s65
    %s69 = sphi 0, %s68
    %s85 = sphi 0, %s69
    %s91 = sphi 0, %s93
    %s94 = sphi 0, %s91
    %s95 = sphi 0, %s94
    %s111 = sphi 0, %s95
    %s117 = sphi 0, %s119
    %s120 = sphi 0, %s117
    %s121 = sphi 0, %s120
    %s137 = sphi 0, %s121
    %s143 = sphi 0, %s145
    %s146 = sphi 0, %s143
    %s147 = sphi 0, %s146
    %s163 = sphi 0, %s147
    %s169 = sphi 0, %s171
    %s172 = sphi 0, %s169
    %s173 = sphi 0, %s172
    %s189 = sphi 0, %s173
    %s195 = sphi 0, %s197
    %s198 = sphi 0, %s195
    %s199 = sphi 0, %s198
    %s215 = sphi 0, %s199
  $region4: #{complex_transpose_conv_block.2} parent=0 // loop_header_branch
    %16 = sbr.rel (%p14) target = $region8
  $region5: #{complex_transpose_conv_block.2} parent=0 // loop_body
    %s18 = ssub.s32 %s13, 1
    %s19 = ssub.s32 %s13, 2
    %s26 = sadd.s32 1, %s21
    %p27 = scmp.ge.s32.totalorder %s26, 2
    %s28 = scalar_select %p27, 0, %s26
    %s29 = sadd.s32 1, %s20
    %s30 = scalar_select %p27, %s29, %s20
    %p31 = scmp.ge.s32.totalorder %s30, 2
    %s32 = scalar_select %p31, 0, %s30
    %s33 = ssub.s32 %s20, %s32
    %s34 = ssub.s32 %s21, %s28
    %s35 = sor.u32 %s33, %s34
    %p36 = scmp.eq.s32.totalorder %s35, 0
    %s38 = sadd.s32 %s37, 1
    %s39 = scalar_select %p36, %s37, %s38
    %p42 = pneg %p36
    %p43 = scmp.eq.s32.totalorder %s13, 3
    %p44 = por %p42, %p43
    %p45 = scmp.ne.s32.totalorder %s37, %s40
    %p46 = scmp.eq.s32.totalorder %s13, 0
    %p47 = por %p45, %p46
    %p48 = scmp.ne.s32.totalorder %s37, %s40
    %p49 = scmp.eq.s32.totalorder %s18, 3
    %p50 = por %p48, %p49
    %p51 = scmp.ne.s32.totalorder %s40, %s41
    %p52 = scmp.eq.s32.totalorder %s18, 0
    %p53 = por %p51, %p52
    %p54 = scmp.ne.s32.totalorder %s40, %s41
    %p55 = scmp.eq.s32.totalorder %s19, 3
    %p56 = por %p54, %p55
    %p58 = scmp.ne.s32.totalorder %s41, %s57
    %p59 = scmp.eq.s32.totalorder %s19, 0
    %p60 = por %p58, %p59
    %s61 = ssub.s32 %s20, %s32
    %s62 = ssub.s32 %s21, %s28
    %s63 = sor.u32 %s61, %s62
    %p64 = scmp.eq.s32.totalorder %s63, 0
    %s66 = sadd.s32 %s65, 1
    %s67 = scalar_select %p64, %s65, %s66
    %p70 = pneg %p64
    %p71 = scmp.eq.s32.totalorder %s13, 3
    %p72 = por %p70, %p71
    %p73 = scmp.ne.s32.totalorder %s65, %s68
    %p74 = scmp.eq.s32.totalorder %s13, 0
    %p75 = por %p73, %p74
    %p76 = scmp.ne.s32.totalorder %s65, %s68
    %p77 = scmp.eq.s32.totalorder %s18, 3
    %p78 = por %p76, %p77
    %p79 = scmp.ne.s32.totalorder %s68, %s69
    %p80 = scmp.eq.s32.totalorder %s18, 0
    %p81 = por %p79, %p80
    %p82 = scmp.ne.s32.totalorder %s68, %s69
    %p83 = scmp.eq.s32.totalorder %s19, 3
    %p84 = por %p82, %p83
    %p86 = scmp.ne.s32.totalorder %s69, %s85
    %p87 = scmp.eq.s32.totalorder %s19, 0
    %p88 = por %p86, %p87
    %s89 = ssub.s32 %s20, %s32
    %p90 = scmp.eq.s32.totalorder %s89, 0
    %s92 = sadd.s32 %s91, 1
    %s93 = scalar_select %p90, %s91, %s92
    %p96 = pneg %p90
    %p97 = scmp.eq.s32.totalorder %s13, 3
    %p98 = por %p96, %p97
    %p99 = scmp.ne.s32.totalorder %s91, %s94
    %p100 = scmp.eq.s32.totalorder %s13, 0
    %p101 = por %p99, %p100
    %p102 = scmp.ne.s32.totalorder %s91, %s94
    %p103 = scmp.eq.s32.totalorder %s18, 3
    %p104 = por %p102, %p103
    %p105 = scmp.ne.s32.totalorder %s94, %s95
    %p106 = scmp.eq.s32.totalorder %s18, 0
    %p107 = por %p105, %p106
    %p108 = scmp.ne.s32.totalorder %s94, %s95
    %p109 = scmp.eq.s32.totalorder %s19, 3
    %p110 = por %p108, %p109
    %p112 = scmp.ne.s32.totalorder %s95, %s111
    %p113 = scmp.eq.s32.totalorder %s19, 0
    %p114 = por %p112, %p113
    %s115 = ssub.s32 %s20, %s32
    %p116 = scmp.eq.s32.totalorder %s115, 0
    %s118 = sadd.s32 %s117, 1
    %s119 = scalar_select %p116, %s117, %s118
    %p122 = pneg %p116
    %p123 = scmp.eq.s32.totalorder %s13, 3
    %p124 = por %p122, %p123
    %p125 = scmp.ne.s32.totalorder %s117, %s120
    %p126 = scmp.eq.s32.totalorder %s13, 0
    %p127 = por %p125, %p126
    %p128 = scmp.ne.s32.totalorder %s117, %s120
    %p129 = scmp.eq.s32.totalorder %s18, 3
    %p130 = por %p128, %p129
    %p131 = scmp.ne.s32.totalorder %s120, %s121
    %p132 = scmp.eq.s32.totalorder %s18, 0
    %p133 = por %p131, %p132
    %p134 = scmp.ne.s32.totalorder %s120, %s121
    %p135 = scmp.eq.s32.totalorder %s19, 3
    %p136 = por %p134, %p135
    %p138 = scmp.ne.s32.totalorder %s121, %s137
    %p139 = scmp.eq.s32.totalorder %s19, 0
    %p140 = por %p138, %p139
    %s141 = ssub.s32 %s20, %s32
    %p142 = scmp.eq.s32.totalorder %s141, 0
    %s144 = sadd.s32 %s143, 1
    %s145 = scalar_select %p142, %s143, %s144
    %p148 = pneg %p142
    %p149 = scmp.eq.s32.totalorder %s13, 3
    %p150 = por %p148, %p149
    %p151 = scmp.ne.s32.totalorder %s143, %s146
    %p152 = scmp.eq.s32.totalorder %s13, 0
    %p153 = por %p151, %p152
    %p154 = scmp.ne.s32.totalorder %s143, %s146
    %p155 = scmp.eq.s32.totalorder %s18, 3
    %p156 = por %p154, %p155
    %p157 = scmp.ne.s32.totalorder %s146, %s147
    %p158 = scmp.eq.s32.totalorder %s18, 0
    %p159 = por %p157, %p158
    %p160 = scmp.ne.s32.totalorder %s146, %s147
    %p161 = scmp.eq.s32.totalorder %s19, 3
    %p162 = por %p160, %p161
    %p164 = scmp.ne.s32.totalorder %s147, %s163
    %p165 = scmp.eq.s32.totalorder %s19, 0
    %p166 = por %p164, %p165
    %s167 = ssub.s32 %s20, %s32
    %p168 = scmp.eq.s32.totalorder %s167, 0
    %s170 = sadd.s32 %s169, 1
    %s171 = scalar_select %p168, %s169, %s170
    %p174 = pneg %p168
    %p175 = scmp.eq.s32.totalorder %s13, 3
    %p176 = por %p174, %p175
    %p177 = scmp.ne.s32.totalorder %s169, %s172
    %p178 = scmp.eq.s32.totalorder %s13, 0
    %p179 = por %p177, %p178
    %p180 = scmp.ne.s32.totalorder %s169, %s172
    %p181 = scmp.eq.s32.totalorder %s18, 3
    %p182 = por %p180, %p181
    %p183 = scmp.ne.s32.totalorder %s172, %s173
    %p184 = scmp.eq.s32.totalorder %s18, 0
    %p185 = por %p183, %p184
    %p186 = scmp.ne.s32.totalorder %s172, %s173
    %p187 = scmp.eq.s32.totalorder %s19, 3
    %p188 = por %p186, %p187
    %p190 = scmp.ne.s32.totalorder %s173, %s189
    %p191 = scmp.eq.s32.totalorder %s19, 0
    %p192 = por %p190, %p191
    %s193 = ssub.s32 %s20, %s32
    %p194 = scmp.eq.s32.totalorder %s193, 0
    %s196 = sadd.s32 %s195, 1
    %s197 = scalar_select %p194, %s195, %s196
    %p200 = pneg %p194
    %p201 = scmp.eq.s32.totalorder %s13, 3
    %p202 = por %p200, %p201
    %p203 = scmp.ne.s32.totalorder %s195, %s198
    %p204 = scmp.eq.s32.totalorder %s13, 0
    %p205 = por %p203, %p204
    %p206 = scmp.ne.s32.totalorder %s195, %s198
    %p207 = scmp.eq.s32.totalorder %s18, 3
    %p208 = por %p206, %p207
    %p209 = scmp.ne.s32.totalorder %s198, %s199
    %p210 = scmp.eq.s32.totalorder %s18, 0
    %p211 = por %p209, %p210
    %p212 = scmp.ne.s32.totalorder %s198, %s199
    %p213 = scmp.eq.s32.totalorder %s19, 3
    %p214 = por %p212, %p213
    %p216 = scmp.ne.s32.totalorder %s199, %s215
    %p217 = scmp.eq.s32.totalorder %s19, 0
    %p218 = por %p216, %p217
    %p219 = scmp.le.s32.totalorder 1, %s13
    %p220 = scmp.lt.s32.totalorder %s13, 5
    %p221 = pnand %p219, %p220
    %p222 = pneg %p221
    // Predicated region
    $region9: #{complex_transpose_conv_block.2} parent=5 // pred_check
      _
    $region10: #{complex_transpose_conv_block.2} parent=5 // pred_check_branch
      %224 = sbr.rel (%p221) target = $region12
    $region11: #{complex_transpose_conv_block.2} parent=5 // pred_region
      %s225 = ssub.s32 %s13, 1
    $region12: #{complex_transpose_conv_block.2} parent=5 // pred_fallthru
      _
    %p226 = scmp.lt.s32.totalorder %s13, 4
    // Predicated region
    $region13: #{complex_transpose_conv_block.2} parent=5 // pred_check
      %p227 = pneg %p226
    $region14: #{complex_transpose_conv_block.2} parent=5 // pred_check_branch
      %229 = sbr.rel (%p227) target = $region16
    $region15: #{complex_transpose_conv_block.2} parent=5 // pred_region
      // Predicated region
      $region17: #{complex_transpose_conv_block.2} parent=15 // pred_check
        %p230 = pneg %p47
      $region18: #{complex_transpose_conv_block.2} parent=15 // pred_check_branch
        %232 = sbr.rel (%p230) target = $region20
      $region19: #{complex_transpose_conv_block.2} parent=15 // pred_region
        %p233 = scmp.lt.s32.totalorder %s20, 1
        %s234 = scalar_select %p233, %s20, 1
        %p235 = scmp.lt.s32.totalorder %s21, 1
        %s236 = scalar_select %p235, %s21, 1
        %s237 = smul.addr %s234, 2
        %s238 = sadd.s32 %s236, %s237
        %s239 = smul.addr %s238, 4
        %s240 = scalar_lea.vmem %s0, %s239
      $region20: #{complex_transpose_conv_block.2} parent=15 // pred_fallthru
        _
      // Predicated region
      $region21: #{complex_transpose_conv_block.2} parent=15 // pred_check
        %p241 = pneg %p75
      $region22: #{complex_transpose_conv_block.2} parent=15 // pred_check_branch
        %243 = sbr.rel (%p241) target = $region24
      $region23: #{complex_transpose_conv_block.2} parent=15 // pred_region
        %p244 = scmp.lt.s32.totalorder %s20, 1
        %s245 = scalar_select %p244, %s20, 1
        %p246 = scmp.lt.s32.totalorder %s21, 1
        %s247 = scalar_select %p246, %s21, 1
        %s248 = smul.addr %s245, 2
        %s249 = sadd.s32 %s247, %s248
        %s250 = smul.addr %s249, 4
        %s251 = scalar_lea.vmem %s1, %s250
      $region24: #{complex_transpose_conv_block.2} parent=15 // pred_fallthru
        _
    $region16: #{complex_transpose_conv_block.2} parent=5 // pred_fallthru
      _
    %p252 = scmp.le.s32.totalorder 1, %s13
    %p253 = scmp.lt.s32.totalorder %s13, 5
    %p254 = pnand %p252, %p253
    %p255 = pneg %p254
    // Predicated region
    $region25: #{complex_transpose_conv_block.2} parent=5 // pred_check
      _
    $region26: #{complex_transpose_conv_block.2} parent=5 // pred_check_branch
      %257 = sbr.rel (%p254) target = $region28
    $region27: #{complex_transpose_conv_block.2} parent=5 // pred_region
      %s258 = ssub.s32 %s13, 1
      %p259 = scmp.lt.s32.totalorder %s22, 1
      %s260 = scalar_select %p259, %s22, 1
      %p261 = scmp.lt.s32.totalorder %s23, 1
      %s262 = scalar_select %p261, %s23, 1
      %s263 = smul.addr %s260, 2
      %s264 = sadd.s32 %s262, %s263
      %s265 = smul.addr %s264, 4
      %s266 = scalar_lea.vmem %s0, %s265
      %p267 = pneg %p53
      %p268 = pneg %p50
      %p269 = scmp.lt.s32.totalorder %s22, 1
      %s270 = scalar_select %p269, %s22, 1
      %p271 = scmp.lt.s32.totalorder %s23, 1
      %s272 = scalar_select %p271, %s23, 1
      %s273 = smul.addr %s270, 2
      %s274 = sadd.s32 %s272, %s273
      %s275 = smul.addr %s274, 4
      %s276 = scalar_lea.vmem %s1, %s275
      %p277 = pneg %p81
      %p278 = pneg %p78
      %p279 = pneg %p107
      %p280 = pneg %p104
      %p281 = scmp.lt.s32.totalorder %s22, 1
      %s282 = scalar_select %p281, %s22, 1
      %s283 = smul.addr %s282, 4
      %s284 = scalar_lea.vmem %s2, %s283
      %p285 = pneg %p133
      %p286 = pneg %p130
      %p287 = scmp.lt.s32.totalorder %s22, 1
      %s288 = scalar_select %p287, %s22, 1
      %s289 = smul.addr %s288, 4
      %s290 = scalar_lea.vmem %s3, %s289
      %p291 = pneg %p159
      %p292 = pneg %p156
      %p293 = scmp.lt.s32.totalorder %s22, 1
      %s294 = scalar_select %p293, %s22, 1
      %s295 = smul.addr %s294, 4
      %s296 = scalar_lea.vmem %s4, %s295
      %p297 = pneg %p185
      %p298 = pneg %p182
      %p299 = scmp.lt.s32.totalorder %s22, 1
      %s300 = scalar_select %p299, %s22, 1
      %s301 = smul.addr %s300, 4
      %s302 = scalar_lea.vmem %s5, %s301
      %p303 = pneg %p211
      %p304 = pneg %p208
      %p305 = scmp.lt.s32.totalorder %s22, 1
      %s306 = scalar_select %p305, %s22, 1
      %s307 = smul.addr %s306, 4
      %s308 = scalar_lea.vmem %s6, %s307
      %p309 = scmp.lt.s32.totalorder %s22, 1
      %s310 = scalar_select %p309, %s22, 1
      %p311 = scmp.lt.s32.totalorder %s23, 1
      %s312 = scalar_select %p311, %s23, 1
      %s313 = smul.addr %s310, 2
      %s314 = sadd.s32 %s312, %s313
      %s315 = smul.addr %s314, 4
      %s316 = scalar_lea.vmem %s0, %s315
      %p317 = scmp.lt.s32.totalorder %s22, 1
      %s318 = scalar_select %p317, %s22, 1
      %p319 = scmp.lt.s32.totalorder %s23, 1
      %s320 = scalar_select %p319, %s23, 1
      %s321 = smul.addr %s318, 2
      %s322 = sadd.s32 %s320, %s321
      %s323 = smul.addr %s322, 4
      %s324 = scalar_lea.vmem %s1, %s323
      %p325 = scmp.lt.s32.totalorder %s22, 1
      %s326 = scalar_select %p325, %s22, 1
      %s327 = smul.addr %s326, 4
      %s328 = scalar_lea.vmem %s2, %s327
      %p329 = scmp.lt.s32.totalorder %s22, 1
      %s330 = scalar_select %p329, %s22, 1
      %s331 = smul.addr %s330, 4
      %s332 = scalar_lea.vmem %s3, %s331
      %p333 = scmp.lt.s32.totalorder %s22, 1
      %s334 = scalar_select %p333, %s22, 1
      %s335 = smul.addr %s334, 4
      %s336 = scalar_lea.vmem %s4, %s335
      %p337 = scmp.lt.s32.totalorder %s22, 1
      %s338 = scalar_select %p337, %s22, 1
      %s339 = smul.addr %s338, 4
      %s340 = scalar_lea.vmem %s5, %s339
      %p341 = scmp.lt.s32.totalorder %s22, 1
      %s342 = scalar_select %p341, %s22, 1
      %s343 = smul.addr %s342, 4
      %s344 = scalar_lea.vmem %s6, %s343
      %p346 = scmp.eq.s32.totalorder %s23, 0
      // Predicated region
      $region29: #{complex_transpose_conv_block.2} parent=27 // pred_check
        %p347 = pneg %p346
      $region30: #{complex_transpose_conv_block.2} parent=27 // pred_check_branch
        %349 = sbr.rel (%p347) target = $region32
      $region31: #{complex_transpose_conv_block.2} parent=27 // pred_region
        %vm350 = vcmask 27648
        %351 = vst.msk [vmem:[%s328] sm:$0xf] %vm350, 0.0
        %352 = vst.msk [vmem:[%s332] sm:$0xf] %vm350, 0.0
        %353 = vst.msk [vmem:[%s336] sm:$0xf] %vm350, 0.0
        %vm354 = vcmask 3072
        %355 = vst.msk [vmem:[%s340] sm:$0xf] %vm354, 0.0
        %356 = vst.msk [vmem:[%s344] sm:$0xf] %vm354, 0.0
      $region32: #{complex_transpose_conv_block.2} parent=27 // pred_fallthru
        _
      %v357 = vld [vmem:[%s316] sm:$0xf]
      %v358 = vpack.c.bf16 %v357, %v357
      %v359 = vld [vmem:[%s324] sm:$0xf]
      %v360 = vpack.c.bf16 %v359, %v359
      %v361 = vld [vmem:[%s328] sm:$0xf]
      %362 = vmatprep.subr.bf16.mxu0 0
      %363 = vmatpush1.bf16.xpose.msra.mxu0 0
      %364 = vmatprep.subr.bf16.mxu0 0
      %365 = vmatpush1.bf16.xpose.msra.mxu0 0
      %366 = vmatprep.subr.bf16.mxu0 0
      %367 = vmatpush1.bf16.xpose.msra.mxu0 0
      %368 = vmatprep.subr.bf16.mxu0 0
      %369 = vmatpush1.bf16.xpose.msra.mxu0 0
      %370 = vmatprep.subr.bf16.mxu0 0
      %371 = vmatpush1.bf16.xpose.msra.mxu0 0
      %372 = vmatprep.subr.bf16.mxu0 0
      %373 = vmatpush1.bf16.xpose.msra.mxu0 0
      %374 = vmatprep.subr.bf16.mxu0 0
      %375 = vmatpush1.bf16.xpose.msra.mxu0 0
      %376 = vmatprep.subr.bf16.mxu0 0
      %377 = vmatpush1.bf16.xpose.msra.mxu0 %v358
      %378 = vmatprep.subr.bf16.mxu0 0
      %379 = vmatpush2.bf16.xpose.msra.mxu0 0
      %380 = vmatprep.subr.bf16.mxu0 0
      %381 = vmatpush2.bf16.xpose.msra.mxu0 0
      %382 = vmatprep.subr.bf16.mxu0 0
      %383 = vmatpush2.bf16.xpose.msra.mxu0 0
      %384 = vmatprep.subr.bf16.mxu0 0
      %385 = vmatpush2.bf16.xpose.msra.mxu0 0
      %386 = vmatprep.subr.bf16.mxu0 0
      %387 = vmatpush2.bf16.xpose.msra.mxu0 0
      %388 = vmatprep.subr.bf16.mxu0 0
      %389 = vmatpush2.bf16.xpose.msra.mxu0 0
      %390 = vmatprep.subr.bf16.mxu0 0
      %391 = vmatpush2.bf16.xpose.msra.mxu0 0
      %392 = vmatprep.subr.bf16.mxu0 0
      %393 = vmatpush2.bf16.xpose.msra.mxu0 0
      %394 = vmatprep.mubr.bf16.mxu0 0
      %395 = vmatmul.mubr.bf16.gmra.mxu0 %v358
      %v396 = vpop.f32.mrf.mxu0
      %v397 = vadd.f32 0.0, %v396
      %v398 = vpop.f32.mrf.mxu0
      %v399 = vpop.f32.mrf.mxu0
      %v400 = vpop.f32.mrf.mxu0
      %401 = vdwg.mxu0
      %v402 = vadd.f32 %v361, %v397
      %vm403 = vcmask 27648
      %404 = vst.msk [vmem:[%s328] sm:$0xf] %vm403, %v402
      %v405 = vld [vmem:[%s332] sm:$0xf]
      %406 = vmatprep.subr.bf16.mxu0 0
      %407 = vmatpush1.bf16.xpose.msra.mxu0 0
      %408 = vmatprep.subr.bf16.mxu0 0
      %409 = vmatpush1.bf16.xpose.msra.mxu0 0
      %410 = vmatprep.subr.bf16.mxu0 0
      %411 = vmatpush1.bf16.xpose.msra.mxu0 0
      %412 = vmatprep.subr.bf16.mxu0 0
      %413 = vmatpush1.bf16.xpose.msra.mxu0 0
      %414 = vmatprep.subr.bf16.mxu0 0
      %415 = vmatpush1.bf16.xpose.msra.mxu0 0
      %416 = vmatprep.subr.bf16.mxu0 0
      %417 = vmatpush1.bf16.xpose.msra.mxu0 0
      %418 = vmatprep.subr.bf16.mxu0 0
      %419 = vmatpush1.bf16.xpose.msra.mxu0 0
      %420 = vmatprep.subr.bf16.mxu0 0
      %421 = vmatpush1.bf16.xpose.msra.mxu0 %v360
      %422 = vmatprep.subr.bf16.mxu0 0
      %423 = vmatpush2.bf16.xpose.msra.mxu0 0
      %424 = vmatprep.subr.bf16.mxu0 0
      %425 = vmatpush2.bf16.xpose.msra.mxu0 0
      %426 = vmatprep.subr.bf16.mxu0 0
      %427 = vmatpush2.bf16.xpose.msra.mxu0 0
      %428 = vmatprep.subr.bf16.mxu0 0
      %429 = vmatpush2.bf16.xpose.msra.mxu0 0
      %430 = vmatprep.subr.bf16.mxu0 0
      %431 = vmatpush2.bf16.xpose.msra.mxu0 0
      %432 = vmatprep.subr.bf16.mxu0 0
      %433 = vmatpush2.bf16.xpose.msra.mxu0 0
      %434 = vmatprep.subr.bf16.mxu0 0
      %435 = vmatpush2.bf16.xpose.msra.mxu0 0
      %436 = vmatprep.subr.bf16.mxu0 0
      %437 = vmatpush2.bf16.xpose.msra.mxu0 0
      %438 = vmatprep.mubr.bf16.mxu0 0
      %439 = vmatmul.mubr.bf16.gmra.mxu0 %v358
      %v440 = vpop.f32.mrf.mxu0
      %v441 = vadd.f32 0.0, %v440
      %v442 = vpop.f32.mrf.mxu0
      %v443 = vpop.f32.mrf.mxu0
      %v444 = vpop.f32.mrf.mxu0
      %445 = vdwg.mxu0
      %v446 = vadd.f32 %v405, %v441
      %447 = vst.msk [vmem:[%s332] sm:$0xf] %vm403, %v446
      %v448 = vld [vmem:[%s336] sm:$0xf]
      %449 = vmatprep.subr.bf16.mxu0 0
      %450 = vmatpush1.bf16.xpose.msra.mxu0 0
      %451 = vmatprep.subr.bf16.mxu0 0
      %452 = vmatpush1.bf16.xpose.msra.mxu0 0
      %453 = vmatprep.subr.bf16.mxu0 0
      %454 = vmatpush1.bf16.xpose.msra.mxu0 0
      %455 = vmatprep.subr.bf16.mxu0 0
      %456 = vmatpush1.bf16.xpose.msra.mxu0 0
      %457 = vmatprep.subr.bf16.mxu0 0
      %458 = vmatpush1.bf16.xpose.msra.mxu0 0
      %459 = vmatprep.subr.bf16.mxu0 0
      %460 = vmatpush1.bf16.xpose.msra.mxu0 0
      %461 = vmatprep.subr.bf16.mxu0 0
      %462 = vmatpush1.bf16.xpose.msra.mxu0 0
      %463 = vmatprep.subr.bf16.mxu0 0
      %464 = vmatpush1.bf16.xpose.msra.mxu0 %v360
      %465 = vmatprep.subr.bf16.mxu0 0
      %466 = vmatpush2.bf16.xpose.msra.mxu0 0
      %467 = vmatprep.subr.bf16.mxu0 0
      %468 = vmatpush2.bf16.xpose.msra.mxu0 0
      %469 = vmatprep.subr.bf16.mxu0 0
      %470 = vmatpush2.bf16.xpose.msra.mxu0 0
      %471 = vmatprep.subr.bf16.mxu0 0
      %472 = vmatpush2.bf16.xpose.msra.mxu0 0
      %473 = vmatprep.subr.bf16.mxu0 0
      %474 = vmatpush2.bf16.xpose.msra.mxu0 0
      %475 = vmatprep.subr.bf16.mxu0 0
      %476 = vmatpush2.bf16.xpose.msra.mxu0 0
      %477 = vmatprep.subr.bf16.mxu0 0
      %478 = vmatpush2.bf16.xpose.msra.mxu0 0
      %479 = vmatprep.subr.bf16.mxu0 0
      %480 = vmatpush2.bf16.xpose.msra.mxu0 0
      %481 = vmatprep.mubr.bf16.mxu0 0
      %482 = vmatmul.mubr.bf16.gmra.mxu0 %v360
      %v483 = vpop.f32.mrf.mxu0
      %v484 = vadd.f32 0.0, %v483
      %v485 = vpop.f32.mrf.mxu0
      %v486 = vpop.f32.mrf.mxu0
      %v487 = vpop.f32.mrf.mxu0
      %488 = vdwg.mxu0
      %v489 = vadd.f32 %v448, %v484
      %490 = vst.msk [vmem:[%s336] sm:$0xf] %vm403, %v489
      %v491 = vld [vmem:[%s340] sm:$0xf]
      %v492 = vunpack.c.l.bf16 %v358
      %vm493 = vcmask 1043456
      %v494 = vsel %vm493, %v492, 0.0
      %495 = vadd.xlane.f32.xlu0 %v494
      %v496 = vpop.xlane.xlu0 %495
      %v497 = vadd.f32 %v491, %v496
      %vm498 = vcmask 3072
      %499 = vst.msk [vmem:[%s340] sm:$0xf] %vm498, %v497
      %v500 = vld [vmem:[%s344] sm:$0xf]
      %v501 = vunpack.c.l.bf16 %v360
      %v502 = vsel %vm493, %v501, 0.0
      %503 = vadd.xlane.f32.xlu0 %v502
      %v504 = vpop.xlane.xlu0 %503
      %v505 = vadd.f32 %v500, %v504
      %506 = vst.msk [vmem:[%s344] sm:$0xf] %vm498, %v505
      %p507 = scmp.lt.s32.totalorder %s22, 1
      %s508 = scalar_select %p507, %s22, 1
      %s509 = smul.addr %s508, 4
      %s510 = scalar_lea.vmem %s2, %s509
      %p511 = scmp.lt.s32.totalorder %s22, 1
      %s512 = scalar_select %p511, %s22, 1
      %s513 = smul.addr %s512, 4
      %s514 = scalar_lea.vmem %s3, %s513
      %p515 = scmp.lt.s32.totalorder %s22, 1
      %s516 = scalar_select %p515, %s22, 1
      %s517 = smul.addr %s516, 4
      %s518 = scalar_lea.vmem %s4, %s517
      %p519 = scmp.lt.s32.totalorder %s22, 1
      %s520 = scalar_select %p519, %s22, 1
      %s521 = smul.addr %s520, 4
      %s522 = scalar_lea.vmem %s5, %s521
      %p523 = scmp.lt.s32.totalorder %s22, 1
      %s524 = scalar_select %p523, %s22, 1
      %s525 = smul.addr %s524, 4
      %s526 = scalar_lea.vmem %s6, %s525
      // Predicated region
      $region33: #{complex_transpose_conv_block.2} parent=27 // pred_check
        %p527 = pneg %p104
      $region34: #{complex_transpose_conv_block.2} parent=27 // pred_check_branch
        %529 = sbr.rel (%p527) target = $region36
      $region35: #{complex_transpose_conv_block.2} parent=27 // pred_region
        _
      $region36: #{complex_transpose_conv_block.2} parent=27 // pred_fallthru
        _
      // Predicated region
      $region37: #{complex_transpose_conv_block.2} parent=27 // pred_check
        %p530 = pneg %p130
      $region38: #{complex_transpose_conv_block.2} parent=27 // pred_check_branch
        %532 = sbr.rel (%p530) target = $region40
      $region39: #{complex_transpose_conv_block.2} parent=27 // pred_region
        _
      $region40: #{complex_transpose_conv_block.2} parent=27 // pred_fallthru
        _
      // Predicated region
      $region41: #{complex_transpose_conv_block.2} parent=27 // pred_check
        %p533 = pneg %p156
      $region42: #{complex_transpose_conv_block.2} parent=27 // pred_check_branch
        %535 = sbr.rel (%p533) target = $region44
      $region43: #{complex_transpose_conv_block.2} parent=27 // pred_region
        _
      $region44: #{complex_transpose_conv_block.2} parent=27 // pred_fallthru
        _
      // Predicated region
      $region45: #{complex_transpose_conv_block.2} parent=27 // pred_check
        %p536 = pneg %p182
      $region46: #{complex_transpose_conv_block.2} parent=27 // pred_check_branch
        %538 = sbr.rel (%p536) target = $region48
      $region47: #{complex_transpose_conv_block.2} parent=27 // pred_region
        _
      $region48: #{complex_transpose_conv_block.2} parent=27 // pred_fallthru
        _
      // Predicated region
      $region49: #{complex_transpose_conv_block.2} parent=27 // pred_check
        %p539 = pneg %p208
      $region50: #{complex_transpose_conv_block.2} parent=27 // pred_check_branch
        %541 = sbr.rel (%p539) target = $region52
      $region51: #{complex_transpose_conv_block.2} parent=27 // pred_region
        _
      $region52: #{complex_transpose_conv_block.2} parent=27 // pred_fallthru
        _
    $region28: #{complex_transpose_conv_block.2} parent=5 // pred_fallthru
      _
    %p542 = scmp.le.s32.totalorder 2, %s13
    // Predicated region
    $region53: #{complex_transpose_conv_block.2} parent=5 // pred_check
      %p543 = pneg %p542
    $region54: #{complex_transpose_conv_block.2} parent=5 // pred_check_branch
      %545 = sbr.rel (%p543) target = $region56
    $region55: #{complex_transpose_conv_block.2} parent=5 // pred_region
      %s546 = ssub.s32 %s13, 2
      // Predicated region
      $region57: #{complex_transpose_conv_block.2} parent=55 // pred_check
        %p547 = pneg %p110
      $region58: #{complex_transpose_conv_block.2} parent=55 // pred_check_branch
        %549 = sbr.rel (%p547) target = $region60
      $region59: #{complex_transpose_conv_block.2} parent=55 // pred_region
        %p550 = scmp.lt.s32.totalorder %s24, 1
        %s551 = scalar_select %p550, %s24, 1
        %s552 = smul.addr %s551, 4
        %s553 = scalar_lea.vmem %s2, %s552
      $region60: #{complex_transpose_conv_block.2} parent=55 // pred_fallthru
        _
      // Predicated region
      $region61: #{complex_transpose_conv_block.2} parent=55 // pred_check
        %p554 = pneg %p136
      $region62: #{complex_transpose_conv_block.2} parent=55 // pred_check_branch
        %556 = sbr.rel (%p554) target = $region64
      $region63: #{complex_transpose_conv_block.2} parent=55 // pred_region
        %p557 = scmp.lt.s32.totalorder %s24, 1
        %s558 = scalar_select %p557, %s24, 1
        %s559 = smul.addr %s558, 4
        %s560 = scalar_lea.vmem %s3, %s559
      $region64: #{complex_transpose_conv_block.2} parent=55 // pred_fallthru
        _
      // Predicated region
      $region65: #{complex_transpose_conv_block.2} parent=55 // pred_check
        %p561 = pneg %p162
      $region66: #{complex_transpose_conv_block.2} parent=55 // pred_check_branch
        %563 = sbr.rel (%p561) target = $region68
      $region67: #{complex_transpose_conv_block.2} parent=55 // pred_region
        %p564 = scmp.lt.s32.totalorder %s24, 1
        %s565 = scalar_select %p564, %s24, 1
        %s566 = smul.addr %s565, 4
        %s567 = scalar_lea.vmem %s4, %s566
      $region68: #{complex_transpose_conv_block.2} parent=55 // pred_fallthru
        _
      // Predicated region
      $region69: #{complex_transpose_conv_block.2} parent=55 // pred_check
        %p568 = pneg %p188
      $region70: #{complex_transpose_conv_block.2} parent=55 // pred_check_branch
        %570 = sbr.rel (%p568) target = $region72
      $region71: #{complex_transpose_conv_block.2} parent=55 // pred_region
        %p571 = scmp.lt.s32.totalorder %s24, 1
        %s572 = scalar_select %p571, %s24, 1
        %s573 = smul.addr %s572, 4
        %s574 = scalar_lea.vmem %s5, %s573
      $region72: #{complex_transpose_conv_block.2} parent=55 // pred_fallthru
        _
      // Predicated region
      $region73: #{complex_transpose_conv_block.2} parent=55 // pred_check
        %p575 = pneg %p214
      $region74: #{complex_transpose_conv_block.2} parent=55 // pred_check_branch
        %577 = sbr.rel (%p575) target = $region76
      $region75: #{complex_transpose_conv_block.2} parent=55 // pred_region
        %p578 = scmp.lt.s32.totalorder %s24, 1
        %s579 = scalar_select %p578, %s24, 1
        %s580 = smul.addr %s579, 4
        %s581 = scalar_lea.vmem %s6, %s580
      $region76: #{complex_transpose_conv_block.2} parent=55 // pred_fallthru
        _
    $region56: #{complex_transpose_conv_block.2} parent=5 // pred_fallthru
      _
  $region6: #{complex_transpose_conv_block.2} parent=0 // loop_footer
    %s17 = sadd.s32 1, %s13
  $region7: #{complex_transpose_conv_block.2} parent=0 // loop_footer_branch
    %12 = sbr.rel target = $region3
  $region8: #{complex_transpose_conv_block.2} parent=0 // loop_exit
    _

// kernel: complex_transpose_conv_block.3
$region0: #{complex_transpose_conv_block.3}
  #allocation0 [shape = 'u32[]', space=smem, size = 0x4, offset = 0x4, fixed_abs, tag = 'smem constant byte address 0x4 - core index']
  #allocation1 [shape = 'u32[144,128]{1,0:T(1,128)}', space=vmem, size = 0x12000, scoped, tag = 'internal scratch']
  %s0 = inlined_call_operand.vmem [shape: f32[2,4,256], index: 0, kind: input, shape index: {}]
  %s1 = inlined_call_operand.vmem [shape: f32[2,4,256], index: 1, kind: input, shape index: {}]
  %s2 = inlined_call_operand.vmem [shape: bf16[64,4], index: 2, kind: input, shape index: {}]
  %s3 = inlined_call_operand.vmem [shape: bf16[64,4], index: 3, kind: input, shape index: {}]
  %s4 = inlined_call_operand.vmem [shape: f32[32,8], index: 4, kind: input, shape index: {}]
  %s5 = inlined_call_operand.vmem [shape: bf16[2,32,256], index: 5, kind: output, shape index: {0}]
  %s6 = inlined_call_operand.vmem [shape: bf16[2,32,256], index: 6, kind: output, shape index: {1}]
  %7 = xla_tuple %s5, %s6
  %s8 = sld [smem:[#allocation0]]
  $region135: #{complex_transpose_conv_block.3} parent=0
    _
  %s10 = ssub.s32 1, %s8
  %s11 = scalar_select 0, %s10, %s8
  $region1: #{complex_transpose_conv_block.3} parent=0
    #allocation2 [shape = 'u8[16384]{0}', space=vmem, size = 0x4000, scoped, tag = 'output window, operand 0']
    #allocation3 [shape = 'u8[16384]{0}', space=vmem, size = 0x4000, scoped, tag = 'output window, operand 1']
    loop: start=0, step=1, limit=6
    $region2: #{complex_transpose_conv_block.3} parent=1 // loop_pre_header
      _
    $region3: #{complex_transpose_conv_block.3} parent=1 // loop_header
      %s13 = sphi 0, %s17
      %p14 = scmp.ge.s32.totalorder %s13, 6
      %s20 = sphi 0, %s32
      %s21 = sphi 0, %s28
      %s22 = sphi 0, %s20
      %s23 = sphi 0, %s21
      %s24 = sphi 0, %s22
      %s25 = sphi 0, %s23
      %s37 = sphi 0, %s39
      %s40 = sphi 0, %s37
      %s41 = sphi 0, %s40
      %s57 = sphi 0, %s41
      %s65 = sphi 0, %s67
      %s68 = sphi 0, %s65
      %s69 = sphi 0, %s68
      %s85 = sphi 0, %s69
      %s89 = sphi 0, %s89
      %s91 = sphi 0, %s89
      %s92 = sphi 0, %s91
      %s106 = sphi 0, %s92
      %s110 = sphi 0, %s110
      %s112 = sphi 0, %s110
      %s113 = sphi 0, %s112
      %s127 = sphi 0, %s113
      %s131 = sphi 0, %s131
      %s133 = sphi 0, %s131
      %s134 = sphi 0, %s133
      %s148 = sphi 0, %s134
      %s156 = sphi 0, %s158
      %s159 = sphi 0, %s156
      %s160 = sphi 0, %s159
      %s176 = sphi 0, %s160
      %s184 = sphi 0, %s186
      %s187 = sphi 0, %s184
      %s188 = sphi 0, %s187
      %s204 = sphi 0, %s188
    $region4: #{complex_transpose_conv_block.3} parent=1 // loop_header_branch
      %16 = sbr.rel (%p14) target = $region8
    $region5: #{complex_transpose_conv_block.3} parent=1 // loop_body
      %s18 = ssub.s32 %s13, 1
      %s19 = ssub.s32 %s13, 2
      %s26 = sadd.s32 1, %s21
      %p27 = scmp.ge.s32.totalorder %s26, 2
      %s28 = scalar_select %p27, 0, %s26
      %s29 = sadd.s32 1, %s20
      %s30 = scalar_select %p27, %s29, %s20
      %p31 = scmp.ge.s32.totalorder %s30, 2
      %s32 = scalar_select %p31, 0, %s30
      %s33 = ssub.s32 %s20, %s32
      %s34 = ssub.s32 %s21, %s28
      %s35 = sor.u32 %s33, %s34
      %p36 = scmp.eq.s32.totalorder %s35, 0
      %s38 = sadd.s32 %s37, 1
      %s39 = scalar_select %p36, %s37, %s38
      %p42 = pneg %p36
      %p43 = scmp.eq.s32.totalorder %s13, 3
      %p44 = por %p42, %p43
      %p45 = scmp.ne.s32.totalorder %s37, %s40
      %p46 = scmp.eq.s32.totalorder %s13, 0
      %p47 = por %p45, %p46
      %p48 = scmp.ne.s32.totalorder %s37, %s40
      %p49 = scmp.eq.s32.totalorder %s18, 3
      %p50 = por %p48, %p49
      %p51 = scmp.ne.s32.totalorder %s40, %s41
      %p52 = scmp.eq.s32.totalorder %s18, 0
      %p53 = por %p51, %p52
      %p54 = scmp.ne.s32.totalorder %s40, %s41
      %p55 = scmp.eq.s32.totalorder %s19, 3
      %p56 = por %p54, %p55
      %p58 = scmp.ne.s32.totalorder %s41, %s57
      %p59 = scmp.eq.s32.totalorder %s19, 0
      %p60 = por %p58, %p59
      %s61 = ssub.s32 %s20, %s32
      %s62 = ssub.s32 %s21, %s28
      %s63 = sor.u32 %s61, %s62
      %p64 = scmp.eq.s32.totalorder %s63, 0
      %s66 = sadd.s32 %s65, 1
      %s67 = scalar_select %p64, %s65, %s66
      %p70 = pneg %p64
      %p71 = scmp.eq.s32.totalorder %s13, 3
      %p72 = por %p70, %p71
      %p73 = scmp.ne.s32.totalorder %s65, %s68
      %p74 = scmp.eq.s32.totalorder %s13, 0
      %p75 = por %p73, %p74
      %p76 = scmp.ne.s32.totalorder %s65, %s68
      %p77 = scmp.eq.s32.totalorder %s18, 3
      %p78 = por %p76, %p77
      %p79 = scmp.ne.s32.totalorder %s68, %s69
      %p80 = scmp.eq.s32.totalorder %s18, 0
      %p81 = por %p79, %p80
      %p82 = scmp.ne.s32.totalorder %s68, %s69
      %p83 = scmp.eq.s32.totalorder %s19, 3
      %p84 = por %p82, %p83
      %p86 = scmp.ne.s32.totalorder %s69, %s85
      %p87 = scmp.eq.s32.totalorder %s19, 0
      %p88 = por %p86, %p87
      %s90 = sadd.s32 %s89, 1
      %p93 = scmp.eq.s32.totalorder %s13, 3
      %p94 = scmp.ne.s32.totalorder %s89, %s91
      %p95 = scmp.eq.s32.totalorder %s13, 0
      %p96 = por %p94, %p95
      %p97 = scmp.ne.s32.totalorder %s89, %s91
      %p98 = scmp.eq.s32.totalorder %s18, 3
      %p99 = por %p97, %p98
      %p100 = scmp.ne.s32.totalorder %s91, %s92
      %p101 = scmp.eq.s32.totalorder %s18, 0
      %p102 = por %p100, %p101
      %p103 = scmp.ne.s32.totalorder %s91, %s92
      %p104 = scmp.eq.s32.totalorder %s19, 3
      %p105 = por %p103, %p104
      %p107 = scmp.ne.s32.totalorder %s92, %s106
      %p108 = scmp.eq.s32.totalorder %s19, 0
      %p109 = por %p107, %p108
      %s111 = sadd.s32 %s110, 1
      %p114 = scmp.eq.s32.totalorder %s13, 3
      %p115 = scmp.ne.s32.totalorder %s110, %s112
      %p116 = scmp.eq.s32.totalorder %s13, 0
      %p117 = por %p115, %p116
      %p118 = scmp.ne.s32.totalorder %s110, %s112
      %p119 = scmp.eq.s32.totalorder %s18, 3
      %p120 = por %p118, %p119
      %p121 = scmp.ne.s32.totalorder %s112, %s113
      %p122 = scmp.eq.s32.totalorder %s18, 0
      %p123 = por %p121, %p122
      %p124 = scmp.ne.s32.totalorder %s112, %s113
      %p125 = scmp.eq.s32.totalorder %s19, 3
      %p126 = por %p124, %p125
      %p128 = scmp.ne.s32.totalorder %s113, %s127
      %p129 = scmp.eq.s32.totalorder %s19, 0
      %p130 = por %p128, %p129
      %s132 = sadd.s32 %s131, 1
      %p135 = scmp.eq.s32.totalorder %s13, 3
      %p136 = scmp.ne.s32.totalorder %s131, %s133
      %p137 = scmp.eq.s32.totalorder %s13, 0
      %p138 = por %p136, %p137
      %p139 = scmp.ne.s32.totalorder %s131, %s133
      %p140 = scmp.eq.s32.totalorder %s18, 3
      %p141 = por %p139, %p140
      %p142 = scmp.ne.s32.totalorder %s133, %s134
      %p143 = scmp.eq.s32.totalorder %s18, 0
      %p144 = por %p142, %p143
      %p145 = scmp.ne.s32.totalorder %s133, %s134
      %p146 = scmp.eq.s32.totalorder %s19, 3
      %p147 = por %p145, %p146
      %p149 = scmp.ne.s32.totalorder %s134, %s148
      %p150 = scmp.eq.s32.totalorder %s19, 0
      %p151 = por %p149, %p150
      %s152 = ssub.s32 %s20, %s32
      %s153 = ssub.s32 %s21, %s28
      %s154 = sor.u32 %s152, %s153
      %p155 = scmp.eq.s32.totalorder %s154, 0
      %s157 = sadd.s32 %s156, 1
      %s158 = scalar_select %p155, %s156, %s157
      %p161 = pneg %p155
      %p162 = scmp.eq.s32.totalorder %s13, 3
      %p163 = por %p161, %p162
      %p164 = scmp.ne.s32.totalorder %s156, %s159
      %p165 = scmp.eq.s32.totalorder %s13, 0
      %p166 = por %p164, %p165
      %p167 = scmp.ne.s32.totalorder %s156, %s159
      %p168 = scmp.eq.s32.totalorder %s18, 3
      %p169 = por %p167, %p168
      %p170 = scmp.ne.s32.totalorder %s159, %s160
      %p171 = scmp.eq.s32.totalorder %s18, 0
      %p172 = por %p170, %p171
      %p173 = scmp.ne.s32.totalorder %s159, %s160
      %p174 = scmp.eq.s32.totalorder %s19, 3
      %p175 = por %p173, %p174
      %p177 = scmp.ne.s32.totalorder %s160, %s176
      %p178 = scmp.eq.s32.totalorder %s19, 0
      %p179 = por %p177, %p178
      %s180 = ssub.s32 %s20, %s32
      %s181 = ssub.s32 %s21, %s28
      %s182 = sor.u32 %s180, %s181
      %p183 = scmp.eq.s32.totalorder %s182, 0
      %s185 = sadd.s32 %s184, 1
      %s186 = scalar_select %p183, %s184, %s185
      %p189 = pneg %p183
      %p190 = scmp.eq.s32.totalorder %s13, 3
      %p191 = por %p189, %p190
      %p192 = scmp.ne.s32.totalorder %s184, %s187
      %p193 = scmp.eq.s32.totalorder %s13, 0
      %p194 = por %p192, %p193
      %p195 = scmp.ne.s32.totalorder %s184, %s187
      %p196 = scmp.eq.s32.totalorder %s18, 3
      %p197 = por %p195, %p196
      %p198 = scmp.ne.s32.totalorder %s187, %s188
      %p199 = scmp.eq.s32.totalorder %s18, 0
      %p200 = por %p198, %p199
      %p201 = scmp.ne.s32.totalorder %s187, %s188
      %p202 = scmp.eq.s32.totalorder %s19, 3
      %p203 = por %p201, %p202
      %p205 = scmp.ne.s32.totalorder %s188, %s204
      %p206 = scmp.eq.s32.totalorder %s19, 0
      %p207 = por %p205, %p206
      %p208 = scmp.le.s32.totalorder 1, %s13
      %p209 = scmp.lt.s32.totalorder %s13, 5
      %p210 = pnand %p208, %p209
      %p211 = pneg %p210
      // Predicated region
      $region9: #{complex_transpose_conv_block.3} parent=5 // pred_check
        _
      $region10: #{complex_transpose_conv_block.3} parent=5 // pred_check_branch
        %213 = sbr.rel (%p210) target = $region12
      $region11: #{complex_transpose_conv_block.3} parent=5 // pred_region
        %s214 = ssub.s32 %s13, 1
        // Predicated region
        $region13: #{complex_transpose_conv_block.3} parent=11 // pred_check
          %p215 = pneg %p102
        $region14: #{complex_transpose_conv_block.3} parent=11 // pred_check_branch
          %217 = sbr.rel (%p215) target = $region16
        $region15: #{complex_transpose_conv_block.3} parent=11 // pred_region
          _
        $region16: #{complex_transpose_conv_block.3} parent=11 // pred_fallthru
          _
        // Predicated region
        $region17: #{complex_transpose_conv_block.3} parent=11 // pred_check
          %p218 = pneg %p123
        $region18: #{complex_transpose_conv_block.3} parent=11 // pred_check_branch
          %220 = sbr.rel (%p218) target = $region20
        $region19: #{complex_transpose_conv_block.3} parent=11 // pred_region
          _
        $region20: #{complex_transpose_conv_block.3} parent=11 // pred_fallthru
          _
        // Predicated region
        $region21: #{complex_transpose_conv_block.3} parent=11 // pred_check
          %p221 = pneg %p144
        $region22: #{complex_transpose_conv_block.3} parent=11 // pred_check_branch
          %223 = sbr.rel (%p221) target = $region24
        $region23: #{complex_transpose_conv_block.3} parent=11 // pred_region
          _
        $region24: #{complex_transpose_conv_block.3} parent=11 // pred_fallthru
          _
      $region12: #{complex_transpose_conv_block.3} parent=5 // pred_fallthru
        _
      %p224 = scmp.lt.s32.totalorder %s13, 4
      // Predicated region
      $region25: #{complex_transpose_conv_block.3} parent=5 // pred_check
        %p225 = pneg %p224
      $region26: #{complex_transpose_conv_block.3} parent=5 // pred_check_branch
        %227 = sbr.rel (%p225) target = $region28
      $region27: #{complex_transpose_conv_block.3} parent=5 // pred_region
        // Predicated region
        $region29: #{complex_transpose_conv_block.3} parent=27 // pred_check
          %p228 = pneg %p47
        $region30: #{complex_transpose_conv_block.3} parent=27 // pred_check_branch
          %230 = sbr.rel (%p228) target = $region32
        $region31: #{complex_transpose_conv_block.3} parent=27 // pred_region
          %p231 = scmp.lt.s32.totalorder %s20, 1
          %s232 = scalar_select %p231, %s20, 1
          %p233 = scmp.lt.s32.totalorder %s21, 1
          %s234 = scalar_select %p233, %s21, 1
          %s235 = smul.addr %s232, 2
          %s236 = sadd.s32 %s234, %s235
          %s237 = smul.addr %s236, 4
          %s238 = scalar_lea.vmem %s0, %s237
        $region32: #{complex_transpose_conv_block.3} parent=27 // pred_fallthru
          _
        // Predicated region
        $region33: #{complex_transpose_conv_block.3} parent=27 // pred_check
          %p239 = pneg %p75
        $region34: #{complex_transpose_conv_block.3} parent=27 // pred_check_branch
          %241 = sbr.rel (%p239) target = $region36
        $region35: #{complex_transpose_conv_block.3} parent=27 // pred_region
          %p242 = scmp.lt.s32.totalorder %s20, 1
          %s243 = scalar_select %p242, %s20, 1
          %p244 = scmp.lt.s32.totalorder %s21, 1
          %s245 = scalar_select %p244, %s21, 1
          %s246 = smul.addr %s243, 2
          %s247 = sadd.s32 %s245, %s246
          %s248 = smul.addr %s247, 4
          %s249 = scalar_lea.vmem %s1, %s248
        $region36: #{complex_transpose_conv_block.3} parent=27 // pred_fallthru
          _
      $region28: #{complex_transpose_conv_block.3} parent=5 // pred_fallthru
        _
      %p250 = scmp.le.s32.totalorder 1, %s13
      %p251 = scmp.lt.s32.totalorder %s13, 5
      %p252 = pnand %p250, %p251
      %p253 = pneg %p252
      // Predicated region
      $region37: #{complex_transpose_conv_block.3} parent=5 // pred_check
        _
      $region38: #{complex_transpose_conv_block.3} parent=5 // pred_check_branch
        %255 = sbr.rel (%p252) target = $region40
      $region39: #{complex_transpose_conv_block.3} parent=5 // pred_region
        %s256 = ssub.s32 %s13, 1
        %p257 = scmp.lt.s32.totalorder %s22, 1
        %s258 = scalar_select %p257, %s22, 1
        %p259 = scmp.lt.s32.totalorder %s23, 1
        %s260 = scalar_select %p259, %s23, 1
        %s261 = smul.addr %s258, 2
        %s262 = sadd.s32 %s260, %s261
        %s263 = smul.addr %s262, 4
        %s264 = scalar_lea.vmem %s0, %s263
        %p265 = pneg %p53
        %p266 = pneg %p50
        %p267 = scmp.lt.s32.totalorder %s22, 1
        %s268 = scalar_select %p267, %s22, 1
        %p269 = scmp.lt.s32.totalorder %s23, 1
        %s270 = scalar_select %p269, %s23, 1
        %s271 = smul.addr %s268, 2
        %s272 = sadd.s32 %s270, %s271
        %s273 = smul.addr %s272, 4
        %s274 = scalar_lea.vmem %s1, %s273
        %p275 = pneg %p81
        %p276 = pneg %p78
        %p277 = pneg %p102
        %p278 = pneg %p99
        %p279 = pneg %p123
        %p280 = pneg %p120
        %p281 = pneg %p144
        %p282 = pneg %p141
        %p283 = pneg %p172
        %p284 = pneg %p169
        %s285 = sand.u32 %s159, 1
        %s286 = sand.u32 %s159, 1
        %s287 = smul.addr %s286, 16
        %s288 = scalar_lea.vmem [#allocation2], %s287
        %p289 = pneg %p200
        %p290 = pneg %p197
        %s291 = sand.u32 %s187, 1
        %s292 = sand.u32 %s187, 1
        %s293 = smul.addr %s292, 16
        %s294 = scalar_lea.vmem [#allocation3], %s293
        %p295 = scmp.lt.s32.totalorder %s22, 1
        %s296 = scalar_select %p295, %s22, 1
        %p297 = scmp.lt.s32.totalorder %s23, 1
        %s298 = scalar_select %p297, %s23, 1
        %s299 = smul.addr %s296, 2
        %s300 = sadd.s32 %s298, %s299
        %s301 = smul.addr %s300, 4
        %s302 = scalar_lea.vmem %s0, %s301
        %p303 = scmp.lt.s32.totalorder %s22, 1
        %s304 = scalar_select %p303, %s22, 1
        %p305 = scmp.lt.s32.totalorder %s23, 1
        %s306 = scalar_select %p305, %s23, 1
        %s307 = smul.addr %s304, 2
        %s308 = sadd.s32 %s306, %s307
        %s309 = smul.addr %s308, 4
        %s310 = scalar_lea.vmem %s1, %s309
        %v312 = vld [vmem:[%s302] sm:$0xf]
        %v313 = vpack.c.bf16 %v312, %v312
        %v314 = vld [vmem:[%s310] sm:$0xf]
        %v315 = vpack.c.bf16 %v314, %v314
        %v316 = vld [vmem:[%s2] sm:$0xf]
        %v317 = vld [vmem:[%s2 + $0x4] sm:$0xf]
        %v318 = vld [vmem:[%s2 + $0x8] sm:$0xf]
        %v319 = vld [vmem:[%s2 + $0xc] sm:$0xf]
        %v320 = vld [vmem:[%s2 + $0x10] sm:$0xf]
        %v321 = vld [vmem:[%s2 + $0x14] sm:$0xf]
        %v322 = vld [vmem:[%s2 + $0x18] sm:$0xf]
        %v323 = vld [vmem:[%s2 + $0x1c] sm:$0xf]
        %v324 = vld [vmem:[%s3] sm:$0xf]
        %v325 = vld [vmem:[%s3 + $0x4] sm:$0xf]
        %v326 = vld [vmem:[%s3 + $0x8] sm:$0xf]
        %v327 = vld [vmem:[%s3 + $0xc] sm:$0xf]
        %v328 = vld [vmem:[%s3 + $0x10] sm:$0xf]
        %v329 = vld [vmem:[%s3 + $0x14] sm:$0xf]
        %v330 = vld [vmem:[%s3 + $0x18] sm:$0xf]
        %v331 = vld [vmem:[%s3 + $0x1c] sm:$0xf]
        %v340 = vunpack.c.l.b16 %v324
        %v341 = vunpack.c.l.b16 %v325
        %v342 = vunpack.c.l.b16 %v326
        %v343 = vunpack.c.l.b16 %v327
        %v344 = vunpack.c.l.b16 %v328
        %v345 = vunpack.c.l.b16 %v329
        %v346 = vunpack.c.l.b16 %v330
        %v347 = vunpack.c.l.b16 %v331
        %v348 = vpack.c.b16 %v341, %v340
        %v349 = vpack.c.b16 %v343, %v342
        %v350 = vpack.c.b16 %v345, %v344
        %v351 = vpack.c.b16 %v347, %v346
        %vm352 = vcmask 31744
        %v354 = vsel %vm352, %v348, 0
        %v357 = vsel %vm352, %v349, 0
        %v360 = vsel %vm352, %v350, 0
        %v363 = vsel %vm352, %v351, 0
        %vm365 = vcmask 1041408
        %v367 = vsel %vm365, %v315, 0
        %369 = vmatprep.subr.bf16.mxu0 0
        %370 = vmatpush1.bf16.msra.mxu0 0
        %371 = vmatprep.subr.bf16.mxu0 0
        %372 = vmatpush1.bf16.msra.mxu0 0
        %373 = vmatprep.subr.bf16.mxu0 0
        %374 = vmatpush1.bf16.msra.mxu0 0
        %375 = vmatprep.subr.bf16.mxu0 0
        %376 = vmatpush1.bf16.msra.mxu0 0
        %377 = vmatprep.subr.bf16.mxu0 0
        %378 = vmatpush1.bf16.msra.mxu0 0
        %379 = vmatprep.subr.bf16.mxu0 0
        %380 = vmatpush1.bf16.msra.mxu0 0
        %381 = vmatprep.subr.bf16.mxu0 0
        %382 = vmatpush1.bf16.msra.mxu0 0
        %383 = vmatprep.subr.bf16.mxu0 0
        %384 = vmatpush1.bf16.msra.mxu0 %v367
        %385 = vmatprep.subr.bf16.mxu0 0
        %386 = vmatpush2.bf16.msra.mxu0 0
        %387 = vmatprep.subr.bf16.mxu0 0
        %388 = vmatpush2.bf16.msra.mxu0 0
        %389 = vmatprep.subr.bf16.mxu0 0
        %390 = vmatpush2.bf16.msra.mxu0 0
        %391 = vmatprep.subr.bf16.mxu0 0
        %392 = vmatpush2.bf16.msra.mxu0 0
        %393 = vmatprep.subr.bf16.mxu0 0
        %394 = vmatpush2.bf16.msra.mxu0 0
        %395 = vmatprep.subr.bf16.mxu0 0
        %396 = vmatpush2.bf16.msra.mxu0 0
        %397 = vmatprep.subr.bf16.mxu0 0
        %398 = vmatpush2.bf16.msra.mxu0 0
        %399 = vmatprep.subr.bf16.mxu0 0
        %400 = vmatpush2.bf16.msra.mxu0 0
        %401 = vmatprep.mubr.bf16.mxu0 0
        %402 = vmatmul.mubr.bf16.gmra.mxu0 %v354
        %v403 = vpop.f32.mrf.mxu0
        %v404 = vadd.f32 0.0, %v403
        %v405 = vpop.f32.mrf.mxu0
        %v406 = vpop.f32.mrf.mxu0
        %v407 = vadd.f32 0.0, %v406
        %v408 = vpop.f32.mrf.mxu0
        %409 = vmatprep.mubr.bf16.mxu0 0
        %410 = vmatmul.mubr.bf16.gmra.mxu0 %v357
        %v411 = vpop.f32.mrf.mxu0
        %v412 = vadd.f32 0.0, %v411
        %v413 = vpop.f32.mrf.mxu0
        %v414 = vpop.f32.mrf.mxu0
        %v415 = vadd.f32 0.0, %v414
        %v416 = vpop.f32.mrf.mxu0
        %417 = vmatprep.mubr.bf16.mxu0 0
        %418 = vmatmul.mubr.bf16.gmra.mxu0 %v360
        %v419 = vpop.f32.mrf.mxu0
        %v420 = vadd.f32 0.0, %v419
        %v421 = vpop.f32.mrf.mxu0
        %v422 = vpop.f32.mrf.mxu0
        %v423 = vadd.f32 0.0, %v422
        %v424 = vpop.f32.mrf.mxu0
        %425 = vmatprep.mubr.bf16.mxu0 0
        %426 = vmatmul.mubr.bf16.gmra.mxu0 %v363
        %v427 = vpop.f32.mrf.mxu0
        %v428 = vadd.f32 0.0, %v427
        %v429 = vpop.f32.mrf.mxu0
        %v430 = vpop.f32.mrf.mxu0
        %v431 = vadd.f32 0.0, %v430
        %v432 = vpop.f32.mrf.mxu0
        %433 = vdwg.mxu0
        %v442 = vunpack.c.l.b16 %v316
        %v443 = vunpack.c.l.b16 %v317
        %v444 = vunpack.c.l.b16 %v318
        %v445 = vunpack.c.l.b16 %v319
        %v446 = vunpack.c.l.b16 %v320
        %v447 = vunpack.c.l.b16 %v321
        %v448 = vunpack.c.l.b16 %v322
        %v449 = vunpack.c.l.b16 %v323
        %v450 = vpack.c.b16 %v443, %v442
        %v451 = vpack.c.b16 %v445, %v444
        %v452 = vpack.c.b16 %v447, %v446
        %v453 = vpack.c.b16 %v449, %v448
        %v455 = vsel %vm352, %v450, 0
        %v458 = vsel %vm352, %v451, 0
        %v461 = vsel %vm352, %v452, 0
        %v464 = vsel %vm352, %v453, 0
        %v467 = vsel %vm365, %v313, 0
        %469 = vmatprep.subr.bf16.mxu0 0
        %470 = vmatpush1.bf16.msra.mxu0 0
        %471 = vmatprep.subr.bf16.mxu0 0
        %472 = vmatpush1.bf16.msra.mxu0 0
        %473 = vmatprep.subr.bf16.mxu0 0
        %474 = vmatpush1.bf16.msra.mxu0 0
        %475 = vmatprep.subr.bf16.mxu0 0
        %476 = vmatpush1.bf16.msra.mxu0 0
        %477 = vmatprep.subr.bf16.mxu0 0
        %478 = vmatpush1.bf16.msra.mxu0 0
        %479 = vmatprep.subr.bf16.mxu0 0
        %480 = vmatpush1.bf16.msra.mxu0 0
        %481 = vmatprep.subr.bf16.mxu0 0
        %482 = vmatpush1.bf16.msra.mxu0 0
        %483 = vmatprep.subr.bf16.mxu0 0
        %484 = vmatpush1.bf16.msra.mxu0 %v467
        %485 = vmatprep.subr.bf16.mxu0 0
        %486 = vmatpush2.bf16.msra.mxu0 0
        %487 = vmatprep.subr.bf16.mxu0 0
        %488 = vmatpush2.bf16.msra.mxu0 0
        %489 = vmatprep.subr.bf16.mxu0 0
        %490 = vmatpush2.bf16.msra.mxu0 0
        %491 = vmatprep.subr.bf16.mxu0 0
        %492 = vmatpush2.bf16.msra.mxu0 0
        %493 = vmatprep.subr.bf16.mxu0 0
        %494 = vmatpush2.bf16.msra.mxu0 0
        %495 = vmatprep.subr.bf16.mxu0 0
        %496 = vmatpush2.bf16.msra.mxu0 0
        %497 = vmatprep.subr.bf16.mxu0 0
        %498 = vmatpush2.bf16.msra.mxu0 0
        %499 = vmatprep.subr.bf16.mxu0 0
        %500 = vmatpush2.bf16.msra.mxu0 0
        %501 = vmatprep.mubr.bf16.mxu0 0
        %502 = vmatmul.mubr.bf16.gmra.mxu0 %v455
        %v503 = vpop.f32.mrf.mxu0
        %v504 = vadd.f32 %v404, %v503
        %v505 = vpop.f32.mrf.mxu0
        %v506 = vpop.f32.mrf.mxu0
        %v507 = vadd.f32 %v407, %v506
        %v508 = vpop.f32.mrf.mxu0
        %509 = vmatprep.mubr.bf16.mxu0 0
        %510 = vmatmul.mubr.bf16.gmra.mxu0 %v458
        %v511 = vpop.f32.mrf.mxu0
        %v512 = vadd.f32 %v412, %v511
        %v513 = vpop.f32.mrf.mxu0
        %v514 = vpop.f32.mrf.mxu0
        %v515 = vadd.f32 %v415, %v514
        %v516 = vpop.f32.mrf.mxu0
        %517 = vmatprep.mubr.bf16.mxu0 0
        %518 = vmatmul.mubr.bf16.gmra.mxu0 %v461
        %v519 = vpop.f32.mrf.mxu0
        %v520 = vadd.f32 %v420, %v519
        %v521 = vpop.f32.mrf.mxu0
        %v522 = vpop.f32.mrf.mxu0
        %v523 = vadd.f32 %v423, %v522
        %v524 = vpop.f32.mrf.mxu0
        %525 = vmatprep.mubr.bf16.mxu0 0
        %526 = vmatmul.mubr.bf16.gmra.mxu0 %v464
        %v527 = vpop.f32.mrf.mxu0
        %v528 = vadd.f32 %v428, %v527
        %v529 = vpop.f32.mrf.mxu0
        %v530 = vpop.f32.mrf.mxu0
        %v531 = vadd.f32 %v431, %v530
        %v532 = vpop.f32.mrf.mxu0
        %533 = vdwg.mxu0
        %v534 = vld [vmem:[%s4] sm:$0xff]
        %v535 = vld [vmem:[%s4 + $0x8] sm:$0xff]
        %v536 = vld [vmem:[%s4 + $0x10] sm:$0xff]
        %v537 = vld [vmem:[%s4 + $0x18] sm:$0xff]
        %539 = vset.pattern.permute.xlu0 0
        %540 = vperm.xlu0 %539, %v534
        %v541 = vpop.permute.xlu0 %540
        %544 = vset.pattern.permute.xlu0 0
        %545 = vperm.xlu0 %544, %v535
        %v546 = vpop.permute.xlu0 %545
        %549 = vset.pattern.permute.xlu0 0
        %550 = vperm.xlu0 %549, %v536
        %v551 = vpop.permute.xlu0 %550
        %554 = vset.pattern.permute.xlu0 0
        %555 = vperm.xlu0 %554, %v537
        %v556 = vpop.permute.xlu0 %555
        %v558 = vmul.f32 %v541, %v504
        %v559 = vmul.f32 %v546, %v507
        %v560 = vmul.f32 %v551, %v512
        %v561 = vmul.f32 %v556, %v515
        %562 = vset.pattern.permute.xlu0 1
        %563 = vperm.xlu0 %562, %v534
        %v564 = vpop.permute.xlu0 %563
        %566 = vset.pattern.permute.xlu0 1
        %567 = vperm.xlu0 %566, %v535
        %v568 = vpop.permute.xlu0 %567
        %570 = vset.pattern.permute.xlu0 1
        %571 = vperm.xlu0 %570, %v536
        %v572 = vpop.permute.xlu0 %571
        %574 = vset.pattern.permute.xlu0 1
        %575 = vperm.xlu0 %574, %v537
        %v576 = vpop.permute.xlu0 %575
        %v578 = vmul.f32 %v564, %v520
        %v579 = vmul.f32 %v568, %v523
        %v580 = vmul.f32 %v572, %v528
        %v581 = vmul.f32 %v576, %v531
        %v582 = vadd.f32 %v558, %v578
        %v583 = vadd.f32 %v559, %v579
        %v584 = vadd.f32 %v560, %v580
        %v585 = vadd.f32 %v561, %v581
        %586 = vset.pattern.permute.xlu0 2
        %587 = vperm.xlu0 %586, %v534
        %v588 = vpop.permute.xlu0 %587
        %590 = vset.pattern.permute.xlu0 2
        %591 = vperm.xlu0 %590, %v535
        %v592 = vpop.permute.xlu0 %591
        %594 = vset.pattern.permute.xlu0 2
        %595 = vperm.xlu0 %594, %v536
        %v596 = vpop.permute.xlu0 %595
        %598 = vset.pattern.permute.xlu0 2
        %599 = vperm.xlu0 %598, %v537
        %v600 = vpop.permute.xlu0 %599
        %v602 = vadd.f32 %v582, %v588
        %v603 = vadd.f32 %v583, %v592
        %v604 = vadd.f32 %v584, %v596
        %v605 = vadd.f32 %v585, %v600
        %v606 = vmax.f32 %v602, 0.0
        %v607 = vmax.f32 %v603, 0.0
        %v608 = vmax.f32 %v604, 0.0
        %v609 = vmax.f32 %v605, 0.0
        %v610 = vpack.c.bf16 %v607, %v606
        %v611 = vpack.c.bf16 %v609, %v608
        %v614 = vunpack.c.l.b16 %v610
        %v615 = vunpack.c.h.b16 %v610
        %v616 = vunpack.c.l.b16 %v611
        %v617 = vunpack.c.h.b16 %v611
        %v618 = vpack.c.b16 %v614, %v614
        %v619 = vpack.c.b16 %v615, %v615
        %v620 = vpack.c.b16 %v616, %v616
        %v621 = vpack.c.b16 %v617, %v617
        %626 = vst [vmem:[%s288] sm:$0xf] %v618
        %627 = vst [vmem:[%s288 + $0x4] sm:$0xf] %v619
        %628 = vst [vmem:[%s288 + $0x8] sm:$0xf] %v620
        %629 = vst [vmem:[%s288 + $0xc] sm:$0xf] %v621
        %630 = vset.pattern.permute.xlu0 3
        %631 = vperm.xlu0 %630, %v534
        %v632 = vpop.permute.xlu0 %631
        %634 = vset.pattern.permute.xlu0 3
        %635 = vperm.xlu0 %634, %v535
        %v636 = vpop.permute.xlu0 %635
        %638 = vset.pattern.permute.xlu0 3
        %639 = vperm.xlu0 %638, %v536
        %v640 = vpop.permute.xlu0 %639
        %642 = vset.pattern.permute.xlu0 3
        %643 = vperm.xlu0 %642, %v537
        %v644 = vpop.permute.xlu0 %643
        %v646 = vmul.f32 %v632, %v504
        %v647 = vmul.f32 %v636, %v507
        %v648 = vmul.f32 %v640, %v512
        %v649 = vmul.f32 %v644, %v515
        %650 = vset.pattern.permute.xlu0 4
        %651 = vperm.xlu0 %650, %v534
        %v652 = vpop.permute.xlu0 %651
        %654 = vset.pattern.permute.xlu0 4
        %655 = vperm.xlu0 %654, %v535
        %v656 = vpop.permute.xlu0 %655
        %658 = vset.pattern.permute.xlu0 4
        %659 = vperm.xlu0 %658, %v536
        %v660 = vpop.permute.xlu0 %659
        %662 = vset.pattern.permute.xlu0 4
        %663 = vperm.xlu0 %662, %v537
        %v664 = vpop.permute.xlu0 %663
        %v666 = vmul.f32 %v652, %v520
        %v667 = vmul.f32 %v656, %v523
        %v668 = vmul.f32 %v660, %v528
        %v669 = vmul.f32 %v664, %v531
        %v670 = vadd.f32 %v646, %v666
        %v671 = vadd.f32 %v647, %v667
        %v672 = vadd.f32 %v648, %v668
        %v673 = vadd.f32 %v649, %v669
        %674 = vset.pattern.permute.xlu0 5
        %675 = vperm.xlu0 %674, %v534
        %v676 = vpop.permute.xlu0 %675
        %678 = vset.pattern.permute.xlu0 5
        %679 = vperm.xlu0 %678, %v535
        %v680 = vpop.permute.xlu0 %679
        %682 = vset.pattern.permute.xlu0 5
        %683 = vperm.xlu0 %682, %v536
        %v684 = vpop.permute.xlu0 %683
        %686 = vset.pattern.permute.xlu0 5
        %687 = vperm.xlu0 %686, %v537
        %v688 = vpop.permute.xlu0 %687
        %v690 = vadd.f32 %v670, %v676
        %v691 = vadd.f32 %v671, %v680
        %v692 = vadd.f32 %v672, %v684
        %v693 = vadd.f32 %v673, %v688
        %v694 = vmax.f32 %v690, 0.0
        %v695 = vmax.f32 %v691, 0.0
        %v696 = vmax.f32 %v692, 0.0
        %v697 = vmax.f32 %v693, 0.0
        %v698 = vpack.c.bf16 %v695, %v694
        %v699 = vpack.c.bf16 %v697, %v696
        %v702 = vunpack.c.l.b16 %v698
        %v703 = vunpack.c.h.b16 %v698
        %v704 = vunpack.c.l.b16 %v699
        %v705 = vunpack.c.h.b16 %v699
        %v706 = vpack.c.b16 %v702, %v702
        %v707 = vpack.c.b16 %v703, %v703
        %v708 = vpack.c.b16 %v704, %v704
        %v709 = vpack.c.b16 %v705, %v705
        %714 = vst [vmem:[%s294] sm:$0xf] %v706
        %715 = vst [vmem:[%s294 + $0x4] sm:$0xf] %v707
        %716 = vst [vmem:[%s294 + $0x8] sm:$0xf] %v708
        %717 = vst [vmem:[%s294 + $0xc] sm:$0xf] %v709
        %s718 = sand.u32 %s159, 1
        %s719 = sand.u32 %s159, 1
        %s720 = smul.addr %s719, 16
        %s721 = scalar_lea.vmem [#allocation2], %s720
        %s722 = sand.u32 %s187, 1
        %s723 = sand.u32 %s187, 1
        %s724 = smul.addr %s723, 16
        %s725 = scalar_lea.vmem [#allocation3], %s724
        // Predicated region
        $region41: #{complex_transpose_conv_block.3} parent=39 // pred_check
          %p726 = pneg %p169
        $region42: #{complex_transpose_conv_block.3} parent=39 // pred_check_branch
          %728 = sbr.rel (%p726) target = $region44
        $region43: #{complex_transpose_conv_block.3} parent=39 // pred_region
          %s729 = smul.addr %s22, 8
          %s730 = sadd.s32 %s23, %s729
          %s731 = smul.addr %s730, 4
          %s732 = scalar_lea.vmem %s5, %s731
          // Predicated region
          $region45: #{complex_transpose_conv_block.3} parent=43 // pred_check
            _
          $region46: #{complex_transpose_conv_block.3} parent=43 // pred_check_branch
            %734 = sbr.rel (0) target = $region48
          $region47: #{complex_transpose_conv_block.3} parent=43 // pred_region
            // Predicated region
            $region49: #{complex_transpose_conv_block.3} parent=47 // pred_check
              _
            $region50: #{complex_transpose_conv_block.3} parent=47 // pred_check_branch
              %736 = sbr.rel target = $region52
            $region51: #{complex_transpose_conv_block.3} parent=47 // pred_region
              // Predicated region
              $region64: #{complex_transpose_conv_block.3} parent=51 // pred_check
                _
              $region65: #{complex_transpose_conv_block.3} parent=51 // pred_check_branch
                %758 = sbr.rel (0) target = $region67
              $region66: #{complex_transpose_conv_block.3} parent=51 // pred_region
                loop: start=0, step=1, limit=1
                $region68: #{complex_transpose_conv_block.3} parent=66 // loop_pre_header
                  _
                $region69: #{complex_transpose_conv_block.3} parent=66 // loop_header
                  %s760 = sphi 0, %s764
                  %p761 = scmp.ge.s32.totalorder %s760, 1
                  %s765 = sphi %s721, %s721
                  %s766 = sphi %s732, %s732
                $region70: #{complex_transpose_conv_block.3} parent=66 // loop_header_branch
                  %763 = sbr.rel (%p761) target = $region74
                $region71: #{complex_transpose_conv_block.3} parent=66 // loop_body
                  _
                $region72: #{complex_transpose_conv_block.3} parent=66 // loop_footer
                  %s764 = sadd.s32 1, %s760
                $region73: #{complex_transpose_conv_block.3} parent=66 // loop_footer_branch
                  %759 = sbr.rel target = $region69
                $region74: #{complex_transpose_conv_block.3} parent=66 // loop_exit
                  _
                %s768 = ssub.s32 16, 1
                loop: start=0, step=1, limit=1
                $region75: #{complex_transpose_conv_block.3} parent=66 // loop_pre_header
                  _
                $region76: #{complex_transpose_conv_block.3} parent=66 // loop_header
                  %s770 = sphi 0, %s774
                  %p771 = scmp.ge.s32.totalorder %s770, 1
                  %s775 = sphi %s721, %s721
                  %s776 = sphi %s732, %s732
                $region77: #{complex_transpose_conv_block.3} parent=66 // loop_header_branch
                  %773 = sbr.rel (%p771) target = $region81
                $region78: #{complex_transpose_conv_block.3} parent=66 // loop_body
                  %v777 = vld [vmem:[%s775] sm:%s768]
                  %778 = vst [vmem:[%s776] sm:%s768] %v777
                  %v779 = vld [vmem:[%s775 + $0x4] sm:%s768]
                  %780 = vst [vmem:[%s776 + $0x8] sm:%s768] %v779
                  %v781 = vld [vmem:[%s775 + $0x8] sm:%s768]
                  %782 = vst [vmem:[%s776 + $0x10] sm:%s768] %v781
                  %v783 = vld [vmem:[%s775 + $0xc] sm:%s768]
                  %784 = vst [vmem:[%s776 + $0x18] sm:%s768] %v783
                $region79: #{complex_transpose_conv_block.3} parent=66 // loop_footer
                  %s774 = sadd.s32 1, %s770
                $region80: #{complex_transpose_conv_block.3} parent=66 // loop_footer_branch
                  %769 = sbr.rel target = $region76
                $region81: #{complex_transpose_conv_block.3} parent=66 // loop_exit
                  _
              $region67: #{complex_transpose_conv_block.3} parent=51 // pred_fallthru
                _
            $region52: #{complex_transpose_conv_block.3} parent=47 // pred_fallthru
              _
            // Predicated region
            $region53: #{complex_transpose_conv_block.3} parent=47 // pred_check
              _
            $region54: #{complex_transpose_conv_block.3} parent=47 // pred_check_branch
              %738 = sbr.rel (0) target = $region56
            $region55: #{complex_transpose_conv_block.3} parent=47 // pred_region
              %s740 = ssub.s32 16, 1
              loop: start=0, step=1, limit=1
              $region57: #{complex_transpose_conv_block.3} parent=55 // loop_pre_header
                _
              $region58: #{complex_transpose_conv_block.3} parent=55 // loop_header
                %s742 = sphi 0, %s746
                %p743 = scmp.ge.s32.totalorder %s742, 1
                %s747 = sphi %s721, %s721
                %s748 = sphi %s732, %s732
              $region59: #{complex_transpose_conv_block.3} parent=55 // loop_header_branch
                %745 = sbr.rel (%p743) target = $region63
              $region60: #{complex_transpose_conv_block.3} parent=55 // loop_body
                %v749 = vld [vmem:[%s747] sm:%s740]
                %750 = vst [vmem:[%s748] sm:%s740] %v749
                %v751 = vld [vmem:[%s747 + $0x4] sm:%s740]
                %752 = vst [vmem:[%s748 + $0x8] sm:%s740] %v751
                %v753 = vld [vmem:[%s747 + $0x8] sm:%s740]
                %754 = vst [vmem:[%s748 + $0x10] sm:%s740] %v753
                %v755 = vld [vmem:[%s747 + $0xc] sm:%s740]
                %756 = vst [vmem:[%s748 + $0x18] sm:%s740] %v755
              $region61: #{complex_transpose_conv_block.3} parent=55 // loop_footer
                %s746 = sadd.s32 1, %s742
              $region62: #{complex_transpose_conv_block.3} parent=55 // loop_footer_branch
                %741 = sbr.rel target = $region58
              $region63: #{complex_transpose_conv_block.3} parent=55 // loop_exit
                _
            $region56: #{complex_transpose_conv_block.3} parent=47 // pred_fallthru
              _
          $region48: #{complex_transpose_conv_block.3} parent=43 // pred_fallthru
            _
          %785 = vnop
        $region44: #{complex_transpose_conv_block.3} parent=39 // pred_fallthru
          _
        // Predicated region
        $region82: #{complex_transpose_conv_block.3} parent=39 // pred_check
          %p786 = pneg %p197
        $region83: #{complex_transpose_conv_block.3} parent=39 // pred_check_branch
          %788 = sbr.rel (%p786) target = $region85
        $region84: #{complex_transpose_conv_block.3} parent=39 // pred_region
          %s789 = smul.addr %s22, 8
          %s790 = sadd.s32 %s23, %s789
          %s791 = smul.addr %s790, 4
          %s792 = scalar_lea.vmem %s6, %s791
          // Predicated region
          $region86: #{complex_transpose_conv_block.3} parent=84 // pred_check
            _
          $region87: #{complex_transpose_conv_block.3} parent=84 // pred_check_branch
            %794 = sbr.rel (0) target = $region89
          $region88: #{complex_transpose_conv_block.3} parent=84 // pred_region
            // Predicated region
            $region90: #{complex_transpose_conv_block.3} parent=88 // pred_check
              _
            $region91: #{complex_transpose_conv_block.3} parent=88 // pred_check_branch
              %796 = sbr.rel target = $region93
            $region92: #{complex_transpose_conv_block.3} parent=88 // pred_region
              // Predicated region
              $region105: #{complex_transpose_conv_block.3} parent=92 // pred_check
                _
              $region106: #{complex_transpose_conv_block.3} parent=92 // pred_check_branch
                %818 = sbr.rel (0) target = $region108
              $region107: #{complex_transpose_conv_block.3} parent=92 // pred_region
                loop: start=0, step=1, limit=1
                $region109: #{complex_transpose_conv_block.3} parent=107 // loop_pre_header
                  _
                $region110: #{complex_transpose_conv_block.3} parent=107 // loop_header
                  %s820 = sphi 0, %s824
                  %p821 = scmp.ge.s32.totalorder %s820, 1
                  %s825 = sphi %s725, %s725
                  %s826 = sphi %s792, %s792
                $region111: #{complex_transpose_conv_block.3} parent=107 // loop_header_branch
                  %823 = sbr.rel (%p821) target = $region115
                $region112: #{complex_transpose_conv_block.3} parent=107 // loop_body
                  _
                $region113: #{complex_transpose_conv_block.3} parent=107 // loop_footer
                  %s824 = sadd.s32 1, %s820
                $region114: #{complex_transpose_conv_block.3} parent=107 // loop_footer_branch
                  %819 = sbr.rel target = $region110
                $region115: #{complex_transpose_conv_block.3} parent=107 // loop_exit
                  _
                %s828 = ssub.s32 16, 1
                loop: start=0, step=1, limit=1
                $region116: #{complex_transpose_conv_block.3} parent=107 // loop_pre_header
                  _
                $region117: #{complex_transpose_conv_block.3} parent=107 // loop_header
                  %s830 = sphi 0, %s834
                  %p831 = scmp.ge.s32.totalorder %s830, 1
                  %s835 = sphi %s725, %s725
                  %s836 = sphi %s792, %s792
                $region118: #{complex_transpose_conv_block.3} parent=107 // loop_header_branch
                  %833 = sbr.rel (%p831) target = $region122
                $region119: #{complex_transpose_conv_block.3} parent=107 // loop_body
                  %v837 = vld [vmem:[%s835] sm:%s828]
                  %838 = vst [vmem:[%s836] sm:%s828] %v837
                  %v839 = vld [vmem:[%s835 + $0x4] sm:%s828]
                  %840 = vst [vmem:[%s836 + $0x8] sm:%s828] %v839
                  %v841 = vld [vmem:[%s835 + $0x8] sm:%s828]
                  %842 = vst [vmem:[%s836 + $0x10] sm:%s828] %v841
                  %v843 = vld [vmem:[%s835 + $0xc] sm:%s828]
                  %844 = vst [vmem:[%s836 + $0x18] sm:%s828] %v843
                $region120: #{complex_transpose_conv_block.3} parent=107 // loop_footer
                  %s834 = sadd.s32 1, %s830
                $region121: #{complex_transpose_conv_block.3} parent=107 // loop_footer_branch
                  %829 = sbr.rel target = $region117
                $region122: #{complex_transpose_conv_block.3} parent=107 // loop_exit
                  _
              $region108: #{complex_transpose_conv_block.3} parent=92 // pred_fallthru
                _
            $region93: #{complex_transpose_conv_block.3} parent=88 // pred_fallthru
              _
            // Predicated region
            $region94: #{complex_transpose_conv_block.3} parent=88 // pred_check
              _
            $region95: #{complex_transpose_conv_block.3} parent=88 // pred_check_branch
              %798 = sbr.rel (0) target = $region97
            $region96: #{complex_transpose_conv_block.3} parent=88 // pred_region
              %s800 = ssub.s32 16, 1
              loop: start=0, step=1, limit=1
              $region98: #{complex_transpose_conv_block.3} parent=96 // loop_pre_header
                _
              $region99: #{complex_transpose_conv_block.3} parent=96 // loop_header
                %s802 = sphi 0, %s806
                %p803 = scmp.ge.s32.totalorder %s802, 1
                %s807 = sphi %s725, %s725
                %s808 = sphi %s792, %s792
              $region100: #{complex_transpose_conv_block.3} parent=96 // loop_header_branch
                %805 = sbr.rel (%p803) target = $region104
              $region101: #{complex_transpose_conv_block.3} parent=96 // loop_body
                %v809 = vld [vmem:[%s807] sm:%s800]
                %810 = vst [vmem:[%s808] sm:%s800] %v809
                %v811 = vld [vmem:[%s807 + $0x4] sm:%s800]
                %812 = vst [vmem:[%s808 + $0x8] sm:%s800] %v811
                %v813 = vld [vmem:[%s807 + $0x8] sm:%s800]
                %814 = vst [vmem:[%s808 + $0x10] sm:%s800] %v813
                %v815 = vld [vmem:[%s807 + $0xc] sm:%s800]
                %816 = vst [vmem:[%s808 + $0x18] sm:%s800] %v815
              $region102: #{complex_transpose_conv_block.3} parent=96 // loop_footer
                %s806 = sadd.s32 1, %s802
              $region103: #{complex_transpose_conv_block.3} parent=96 // loop_footer_branch
                %801 = sbr.rel target = $region99
              $region104: #{complex_transpose_conv_block.3} parent=96 // loop_exit
                _
            $region97: #{complex_transpose_conv_block.3} parent=88 // pred_fallthru
              _
          $region89: #{complex_transpose_conv_block.3} parent=84 // pred_fallthru
            _
          %845 = vnop
        $region85: #{complex_transpose_conv_block.3} parent=39 // pred_fallthru
          _
      $region40: #{complex_transpose_conv_block.3} parent=5 // pred_fallthru
        _
      %p846 = scmp.le.s32.totalorder 2, %s13
      // Predicated region
      $region123: #{complex_transpose_conv_block.3} parent=5 // pred_check
        %p847 = pneg %p846
      $region124: #{complex_transpose_conv_block.3} parent=5 // pred_check_branch
        %849 = sbr.rel (%p847) target = $region126
      $region125: #{complex_transpose_conv_block.3} parent=5 // pred_region
        %s850 = ssub.s32 %s13, 2
        // Predicated region
        $region127: #{complex_transpose_conv_block.3} parent=125 // pred_check
          %p851 = pneg %p175
        $region128: #{complex_transpose_conv_block.3} parent=125 // pred_check_branch
          %853 = sbr.rel (%p851) target = $region130
        $region129: #{complex_transpose_conv_block.3} parent=125 // pred_region
          %s854 = sand.u32 %s160, 1
          %s855 = sand.u32 %s160, 1
          %s856 = smul.addr %s855, 16
          %s857 = scalar_lea.vmem [#allocation2], %s856
        $region130: #{complex_transpose_conv_block.3} parent=125 // pred_fallthru
          _
        // Predicated region
        $region131: #{complex_transpose_conv_block.3} parent=125 // pred_check
          %p858 = pneg %p203
        $region132: #{complex_transpose_conv_block.3} parent=125 // pred_check_branch
          %860 = sbr.rel (%p858) target = $region134
        $region133: #{complex_transpose_conv_block.3} parent=125 // pred_region
          %s861 = sand.u32 %s188, 1
          %s862 = sand.u32 %s188, 1
          %s863 = smul.addr %s862, 16
          %s864 = scalar_lea.vmem [#allocation3], %s863
        $region134: #{complex_transpose_conv_block.3} parent=125 // pred_fallthru
          _
      $region126: #{complex_transpose_conv_block.3} parent=5 // pred_fallthru
        _
    $region6: #{complex_transpose_conv_block.3} parent=1 // loop_footer
      %s17 = sadd.s32 1, %s13
    $region7: #{complex_transpose_conv_block.3} parent=1 // loop_footer_branch
      %12 = sbr.rel target = $region3
    $region8: #{complex_transpose_conv_block.3} parent=1 // loop_exit
      _

</llo_original>
